<compile_context>
chip_gen: v7x
topology: tpu7x:2x2x1
jax: 0.10.0
libtpu: 0.0.40
codegen_flags: <defaults>
</compile_context>

<pallas_src>
import functools

import jax
import jax.numpy as jnp
from jax.experimental import pallas as pl
from jax.experimental.pallas import tpu as pltpu

DIM_K = 16  # lambda-networks default query/key depth


def _fused_lambda_kernel(feat_ref, fw_ref, wq_ref, wk_ref, wv_ref, o_ref, *,
                         depth, head_num, dim_k, dim_v, n_feat):
    """All `depth` LambdaLayerV2 layers + output concat for one batch block."""
    blk_b = feat_ref.shape[0]
    d = feat_ref.shape[2]
    n = n_feat
    cdt = o_ref.dtype
    f32 = jnp.float32

    x0 = feat_ref[...]                                # (B', N, D) compute dtype
    fw = fw_ref[...]                                  # (B', N, D)

    # result[0] = feature  (torch: result.append(feature))
    o_ref[:, 0:n, :] = x0

    # Flatten batch*feature rows so the projections are single big MXU matmuls.
    # (Layout-trivial when n is a multiple of 8 — the sublane tile.)
    input1 = x0.reshape(blk_b * n, d)                 # query source
    input2 = fw.reshape(blk_b * n, d)                 # key/value (context) source

    for i in range(depth):                            # static unroll, depth is small
        wq = wq_ref[i]                                # (D, H*K)
        wk = wk_ref[i]                                # (D, K)
        wv = wv_ref[i]                                # (D, V)

        q = jnp.dot(input1, wq, preferred_element_type=f32)    # (B'N, H*K)
        k = jnp.dot(input2, wk, preferred_element_type=f32)    # (B'N, K)
        v = jnp.dot(input2, wv, preferred_element_type=f32)    # (B'N, V)

        # per-sample softmax over the feature axis (N kept un-tiled in the block)
        k3 = k.reshape(blk_b, n, dim_k)                         # (B', N, K)
        k3 = k3 - jnp.max(k3, axis=1, keepdims=True)
        e3 = jnp.exp(k3)
        p3 = e3 / jnp.sum(e3, axis=1, keepdims=True)            # (B', N, K) f32

        v3 = v.reshape(blk_b, n, dim_v)                         # (B', N, V)

        # content lambda per sample: lam[b] = p[b]^T v[b] -> (B', K, V)
        # (explicit small transpose of the probabilities, then one canonical
        #  batched matmul — the same pattern as the flash-attention acc update)
        p_t = jnp.swapaxes(p3, 1, 2).astype(cdt)                # (B', K, N)
        lam = jnp.einsum('bkn,bnv->bkv', p_t, v3.astype(cdt),
                         preferred_element_type=f32).astype(cdt)  # (B', K, V)

        # Block-diagonal lambda (H*K, H*V): one batched matmul applies every
        # head at once — no per-head lane slicing / narrow output concats.
        zeros = jnp.zeros_like(lam)
        lam_bd = jnp.concatenate(
            [jnp.concatenate(
                [lam if hc == hr else zeros for hc in range(head_num)], axis=2)
             for hr in range(head_num)],
            axis=1)                                             # (B', H*K, H*V)

        q3 = q.reshape(blk_b, n, head_num * dim_k).astype(cdt)  # (B', N, H*K)
        out3 = jnp.einsum('bnk,bkv->bnv', q3, lam_bd,
                          preferred_element_type=f32)           # (B', N, H*V=D)
        y = out3.astype(cdt)

        # result[i + 1] = layer output  (torch: result.append(input2))
        o_ref[:, (i + 1) * n:(i + 2) * n, :] = y

        # torch: input2 = Lambda[i](input1, input2); if i == 0: input1 = input2
        y_flat = y.reshape(blk_b * n, d)
        input2 = y_flat
        if i == 0:
            input1 = y_flat


def _pick_block_b(batch, n, d, depth, *, elem_bytes=2, vmem_budget=24 << 20,
                  max_block=256):
    """Largest divisor-of-batch block whose pipelined footprint fits the budget."""
    per_sample = ((2 * 2 * n * d + 2 * (depth + 1) * n * d) * elem_bytes
                  + 8 * n * d * 4)                 # rough live f32 intermediates
    cap = max(1, min(max_block, vmem_budget // max(per_sample, 1)))
    blk = 1
    for c in range(1, batch + 1):
        if batch % c == 0 and c <= cap:
            blk = c
    # keep >= 2 grid steps when cheap so v7x megacore can shard the batch axis
    if batch // blk == 1 and blk >= 16 and blk % 2 == 0:
        blk //= 2
    return blk


def lambda_interaction_forward(feature, field_weight, params, *, head_num,
                               depth, compute_dtype=jnp.bfloat16, block_b=None):
    """Mirrors LambdaInteractionLayerV2.forward.  Returns (B, (depth+1)*N, D)."""
    if isinstance(feature, tuple):
        field_weight = feature[1]
        feature = feature[0]
    if field_weight is None:
        field_weight = feature       # LambdaLayerV2(x, None) -> context = x

    b, n, d = feature.shape
    wq_all, wk_all, wv_all = params  # (depth,D,H*K), (depth,D,K), (depth,D,V)
    dim_k = wk_all.shape[-1]
    dim_v = wv_all.shape[-1]
    assert head_num * dim_v == d, "dim_out must equal embedSize"
    assert wq_all.shape[0] == depth

    cdt = compute_dtype
    feature_c = feature.astype(cdt)
    fw_c = field_weight.astype(cdt)
    wq_c, wk_c, wv_c = (w.astype(cdt) for w in (wq_all, wk_all, wv_all))

    if block_b is None:
        block_b = _pick_block_b(b, n, d, depth)
    assert b % block_b == 0

    kernel = functools.partial(_fused_lambda_kernel, depth=depth,
                               head_num=head_num, dim_k=dim_k, dim_v=dim_v,
                               n_feat=n)
    n_out = (depth + 1) * n

    def weight_spec(shape):
        return pl.BlockSpec(shape, lambda g: (0, 0, 0))

    return pl.pallas_call(
        kernel,
        out_shape=jax.ShapeDtypeStruct((b, n_out, d), cdt),
        grid=(b // block_b,),
        in_specs=[
            pl.BlockSpec((block_b, n, d), lambda g: (g, 0, 0)),
            pl.BlockSpec((block_b, n, d), lambda g: (g, 0, 0)),
            weight_spec((depth, d, head_num * dim_k)),
            weight_spec((depth, d, dim_k)),
            weight_spec((depth, d, dim_v)),
        ],
        out_specs=pl.BlockSpec((block_b, n_out, d), lambda g: (g, 0, 0)),
        compiler_params=pltpu.CompilerParams(
            dimension_semantics=("parallel",),
            vmem_limit_bytes=32 * 1024 * 1024),
    )(feature_c, fw_c, wq_c, wk_c, wv_c)


def init_params(key, embed_size, head_num, depth, dim_k=DIM_K):
    """Deterministic weights for `depth` LambdaLayerV2 modules (no-bias Linears)."""
    assert embed_size % head_num == 0
    dim_v = embed_size // head_num
    scale = 1.0 / jnp.sqrt(embed_size)
    kq, kk, kv = jax.random.split(key, 3)
    wq = scale * jax.random.normal(kq, (depth, embed_size, head_num * dim_k),
                                   jnp.float32)
    wk = scale * jax.random.normal(kk, (depth, embed_size, dim_k), jnp.float32)
    wv = scale * jax.random.normal(kv, (depth, embed_size, dim_v), jnp.float32)
    return wq, wk, wv


# ---- pure-JAX reference (same precision recipe; for correctness check only) ----
def _ref_lambda_layer(x, ctx, wq, wk, wv, head_num, cdt):
    b, n, _ = x.shape
    dim_k = wk.shape[-1]
    dim_v = wv.shape[-1]
    f32 = jnp.float32
    q = jnp.einsum('bnd,dk->bnk', x, wq, preferred_element_type=f32)
    k = jnp.einsum('bnd,dk->bnk', ctx, wk, preferred_element_type=f32)
    v = jnp.einsum('bnd,dv->bnv', ctx, wv, preferred_element_type=f32)
    p = jax.nn.softmax(k, axis=1)
    lam = jnp.einsum('bnk,bnv->bkv', p.astype(cdt), v.astype(cdt),
                     preferred_element_type=f32).astype(cdt)
    q4 = q.reshape(b, n, head_num, dim_k).astype(cdt)
    out = jnp.einsum('bnhk,bkv->bnhv', q4, lam, preferred_element_type=f32)
    return out.reshape(b, n, head_num * dim_v).astype(cdt)


def _ref_forward(feature, field_weight, params, head_num, depth, cdt):
    wq_all, wk_all, wv_all = (w.astype(cdt) for w in params)
    feature = feature.astype(cdt)
    fw = feature if field_weight is None else field_weight.astype(cdt)
    result = [feature]
    input1, input2 = feature, fw
    for i in range(depth):
        y = _ref_lambda_layer(input1, input2, wq_all[i], wk_all[i], wv_all[i],
                              head_num, cdt)
        input2 = y
        if i == 0:
            input1 = y
        result.append(y)
    return jnp.concatenate(result, axis=1)


if __name__ == "__main__":
    batch, feature_numb, embed_size = 2, 8, 24
    head_num, depth = 3, 4

    key = jax.random.PRNGKey(0)
    kf, kw, kp = jax.random.split(key, 3)
    feature = jax.random.normal(kf, (batch, feature_numb, embed_size), jnp.float32)
    field_weight = jax.random.normal(kw, (batch, feature_numb, embed_size),
                                     jnp.float32)
    params = init_params(kp, embed_size, head_num, depth)

    out = lambda_interaction_forward(feature, field_weight, params,
                                     head_num=head_num, depth=depth)
    out = jax.block_until_ready(out)

    assert out.shape == (batch, feature_numb * (depth + 1), embed_size), out.shape
    ref = _ref_forward(feature, field_weight, params, head_num, depth,
                       jnp.bfloat16)
    assert jnp.allclose(out.astype(jnp.float32), ref.astype(jnp.float32),
                        atol=1e-2, rtol=1e-2), "mismatch vs JAX reference"

    print("KERNEL_OK")
</pallas_src>

<mosaic_0001>
module attributes {stable_mosaic.version = 11 : i64} {
  func.func @_fused_lambda_kernel(%arg0: i32, %arg1: memref<2x8x24xbf16, #tpu.memory_space<vmem>>, %arg2: memref<2x8x24xbf16, #tpu.memory_space<vmem>>, %arg3: memref<4x24x48xbf16, #tpu.memory_space<vmem>>, %arg4: memref<4x24x16xbf16, #tpu.memory_space<vmem>>, %arg5: memref<4x24x8xbf16, #tpu.memory_space<vmem>>, %arg6: memref<2x40x24xbf16, #tpu.memory_space<vmem>>) attributes {dimension_semantics = [#tpu.dimension_semantics<parallel>], iteration_bounds = array<i64: 1>, scalar_prefetch = 0 : i64, scratch_operands = 0 : i64, tpu.core_type = #tpu.core_type<tc>, window_params = [{transform_indices = @transform_0, window_bounds = array<i64: 2, 8, 24>}, {transform_indices = @transform_1, window_bounds = array<i64: 2, 8, 24>}, {pipeline_mode = #tpu.pipeline_mode<synchronous>, transform_indices = @transform_2, window_bounds = array<i64: 4, 24, 48>}, {pipeline_mode = #tpu.pipeline_mode<synchronous>, transform_indices = @transform_3, window_bounds = array<i64: 4, 24, 16>}, {pipeline_mode = #tpu.pipeline_mode<synchronous>, transform_indices = @transform_4, window_bounds = array<i64: 4, 24, 8>}, {transform_indices = @transform_5, window_bounds = array<i64: 2, 40, 24>}]} {
    %c0 = arith.constant 0 : index
    %c0_0 = arith.constant 0 : index
    %c0_1 = arith.constant 0 : index
    %0 = vector.load %arg1[%c0, %c0_0, %c0_1] : memref<2x8x24xbf16, #tpu.memory_space<vmem>>, vector<2x8x24xbf16>
    %c0_2 = arith.constant 0 : index
    %c0_3 = arith.constant 0 : index
    %c0_4 = arith.constant 0 : index
    %1 = vector.load %arg2[%c0_2, %c0_3, %c0_4] : memref<2x8x24xbf16, #tpu.memory_space<vmem>>, vector<2x8x24xbf16>
    %c0_5 = arith.constant 0 : index
    %c0_6 = arith.constant 0 : index
    %c0_7 = arith.constant 0 : index
    %2 = vector.load %arg6[%c0_5, %c0_6, %c0_7] : memref<2x40x24xbf16, #tpu.memory_space<vmem>>, vector<2x8x24xbf16>
    tpu.vector_store %arg6[%c0_5, %c0_6, %c0_7], %0 {strides = array<i32>} : memref<2x40x24xbf16, #tpu.memory_space<vmem>>, vector<2x8x24xbf16>,
    %3 = vector.shape_cast %0 : vector<2x8x24xbf16> to vector<16x24xbf16>
    %4 = vector.shape_cast %1 : vector<2x8x24xbf16> to vector<16x24xbf16>
    %c0_8 = arith.constant 0 : index
    %c0_9 = arith.constant 0 : index
    %c0_10 = arith.constant 0 : index
    %5 = vector.load %arg3[%c0_8, %c0_9, %c0_10] : memref<4x24x48xbf16, #tpu.memory_space<vmem>>, vector<1x24x48xbf16>
    %6 = vector.shape_cast %5 : vector<1x24x48xbf16> to vector<24x48xbf16>
    %c0_11 = arith.constant 0 : index
    %c0_12 = arith.constant 0 : index
    %c0_13 = arith.constant 0 : index
    %7 = vector.load %arg4[%c0_11, %c0_12, %c0_13] : memref<4x24x16xbf16, #tpu.memory_space<vmem>>, vector<1x24x16xbf16>
    %8 = vector.shape_cast %7 : vector<1x24x16xbf16> to vector<24x16xbf16>
    %c0_14 = arith.constant 0 : index
    %c0_15 = arith.constant 0 : index
    %c0_16 = arith.constant 0 : index
    %9 = vector.load %arg5[%c0_14, %c0_15, %c0_16] : memref<4x24x8xbf16, #tpu.memory_space<vmem>>, vector<1x24x8xbf16>
    %10 = vector.shape_cast %9 : vector<1x24x8xbf16> to vector<24x8xbf16>
    %cst = arith.constant dense<0.000000e+00> : vector<16x48xf32>
    %11 = tpu.matmul %3, %6, %cst {dimension_numbers = #tpu.dot_dimension_numbers<[1], [0], [0], [1], [0, 0, 1, 1], [], []>} : vector<16x24xbf16>, vector<24x48xbf16>, vector<16x48xf32> -> vector<16x48xf32>
    %cst_17 = arith.constant dense<0.000000e+00> : vector<16x16xf32>
    %12 = tpu.matmul %4, %8, %cst_17 {dimension_numbers = #tpu.dot_dimension_numbers<[1], [0], [0], [1], [0, 0, 1, 1], [], []>} : vector<16x24xbf16>, vector<24x16xbf16>, vector<16x16xf32> -> vector<16x16xf32>
    %cst_18 = arith.constant dense<0.000000e+00> : vector<16x8xf32>
    %13 = tpu.matmul %4, %10, %cst_18 {dimension_numbers = #tpu.dot_dimension_numbers<[1], [0], [0], [1], [0, 0, 1, 1], [], []>} : vector<16x24xbf16>, vector<24x8xbf16>, vector<16x8xf32> -> vector<16x8xf32>
    %14 = vector.shape_cast %12 : vector<16x16xf32> to vector<2x8x16xf32>
    %cst_19 = arith.constant dense<0xFF800000> : vector<2x16xf32>
    %15 = vector.multi_reduction <maximumf>, %14, %cst_19 [1] : vector<2x8x16xf32> to vector<2x16xf32>
    %16 = vector.shape_cast %15 : vector<2x16xf32> to vector<2x1x16xf32>
    %17 = vector.broadcast %16 : vector<2x1x16xf32> to vector<2x8x16xf32>
    %18 = arith.subf %14, %17 : vector<2x8x16xf32>
    %19 = math.exp %18 : vector<2x8x16xf32>
    %cst_20 = arith.constant dense<0.000000e+00> : vector<2x16xf32>
    %20 = vector.multi_reduction <add>, %19, %cst_20 [1] : vector<2x8x16xf32> to vector<2x16xf32>
    %21 = vector.shape_cast %20 : vector<2x16xf32> to vector<2x1x16xf32>
    %22 = vector.broadcast %21 : vector<2x1x16xf32> to vector<2x8x16xf32>
    %23 = arith.divf %19, %22 : vector<2x8x16xf32>
    %24 = vector.shape_cast %13 : vector<16x8xf32> to vector<2x8x8xf32>
    %25 = tpu.transpose %23, [0, 2, 1] : vector<2x8x16xf32> -> vector<2x16x8xf32>
    %26 = arith.truncf %25 : vector<2x16x8xf32> to vector<2x16x8xbf16>
    %27 = arith.truncf %24 : vector<2x8x8xf32> to vector<2x8x8xbf16>
    "tpu.trace_start"() <{level = 10 : i32, message = "bkn,bnv->bkv"}> : () -> ()
    %cst_21 = arith.constant dense<0.000000e+00> : vector<2x16x8xf32>
    %28 = tpu.matmul %26, %27, %cst_21 {dimension_numbers = #tpu.dot_dimension_numbers<[2], [1], [1], [2], [0, 0, 0, 1, 1, 2], [0], [0]>} : vector<2x16x8xbf16>, vector<2x8x8xbf16>, vector<2x16x8xf32> -> vector<2x16x8xf32>
    "tpu.trace_stop"() : () -> ()
    %29 = arith.truncf %28 : vector<2x16x8xf32> to vector<2x16x8xbf16>
    %cst_22 = arith.constant 0.000000e+00 : bf16
    %30 = vector.broadcast %cst_22 : bf16 to vector<2x16x8xbf16>
    %31 = tpu.concatenate %29, %30, %30 in 2 : vector<2x16x8xbf16>, vector<2x16x8xbf16>, vector<2x16x8xbf16> -> vector<2x16x24xbf16>
    %32 = tpu.concatenate %30, %29, %30 in 2 : vector<2x16x8xbf16>, vector<2x16x8xbf16>, vector<2x16x8xbf16> -> vector<2x16x24xbf16>
    %33 = tpu.concatenate %30, %30, %29 in 2 : vector<2x16x8xbf16>, vector<2x16x8xbf16>, vector<2x16x8xbf16> -> vector<2x16x24xbf16>
    %34 = tpu.concatenate %31, %32, %33 in 1 : vector<2x16x24xbf16>, vector<2x16x24xbf16>, vector<2x16x24xbf16> -> vector<2x48x24xbf16>
    %35 = vector.shape_cast %11 : vector<16x48xf32> to vector<2x8x48xf32>
    %36 = arith.truncf %35 : vector<2x8x48xf32> to vector<2x8x48xbf16>
    "tpu.trace_start"() <{level = 10 : i32, message = "bnk,bkv->bnv"}> : () -> ()
    %cst_23 = arith.constant dense<0.000000e+00> : vector<2x8x24xf32>
    %37 = tpu.matmul %36, %34, %cst_23 {dimension_numbers = #tpu.dot_dimension_numbers<[2], [1], [1], [2], [0, 0, 0, 1, 1, 2], [0], [0]>} : vector<2x8x48xbf16>, vector<2x48x24xbf16>, vector<2x8x24xf32> -> vector<2x8x24xf32>
    "tpu.trace_stop"() : () -> ()
    %38 = arith.truncf %37 : vector<2x8x24xf32> to vector<2x8x24xbf16>
    %c0_24 = arith.constant 0 : index
    %c8 = arith.constant 8 : index
    %c0_25 = arith.constant 0 : index
    %39 = vector.load %arg6[%c0_24, %c8, %c0_25] : memref<2x40x24xbf16, #tpu.memory_space<vmem>>, vector<2x8x24xbf16>
    tpu.vector_store %arg6[%c0_24, %c8, %c0_25], %38 {strides = array<i32>} : memref<2x40x24xbf16, #tpu.memory_space<vmem>>, vector<2x8x24xbf16>,
    %40 = vector.shape_cast %38 : vector<2x8x24xbf16> to vector<16x24xbf16>
    %c1 = arith.constant 1 : index
    %c0_26 = arith.constant 0 : index
    %c0_27 = arith.constant 0 : index
    %41 = vector.load %arg3[%c1, %c0_26, %c0_27] : memref<4x24x48xbf16, #tpu.memory_space<vmem>>, vector<1x24x48xbf16>
    %42 = vector.shape_cast %41 : vector<1x24x48xbf16> to vector<24x48xbf16>
    %c1_28 = arith.constant 1 : index
    %c0_29 = arith.constant 0 : index
    %c0_30 = arith.constant 0 : index
    %43 = vector.load %arg4[%c1_28, %c0_29, %c0_30] : memref<4x24x16xbf16, #tpu.memory_space<vmem>>, vector<1x24x16xbf16>
    %44 = vector.shape_cast %43 : vector<1x24x16xbf16> to vector<24x16xbf16>
    %c1_31 = arith.constant 1 : index
    %c0_32 = arith.constant 0 : index
    %c0_33 = arith.constant 0 : index
    %45 = vector.load %arg5[%c1_31, %c0_32, %c0_33] : memref<4x24x8xbf16, #tpu.memory_space<vmem>>, vector<1x24x8xbf16>
    %46 = vector.shape_cast %45 : vector<1x24x8xbf16> to vector<24x8xbf16>
    %cst_34 = arith.constant dense<0.000000e+00> : vector<16x48xf32>
    %47 = tpu.matmul %40, %42, %cst_34 {dimension_numbers = #tpu.dot_dimension_numbers<[1], [0], [0], [1], [0, 0, 1, 1], [], []>} : vector<16x24xbf16>, vector<24x48xbf16>, vector<16x48xf32> -> vector<16x48xf32>
    %cst_35 = arith.constant dense<0.000000e+00> : vector<16x16xf32>
    %48 = tpu.matmul %40, %44, %cst_35 {dimension_numbers = #tpu.dot_dimension_numbers<[1], [0], [0], [1], [0, 0, 1, 1], [], []>} : vector<16x24xbf16>, vector<24x16xbf16>, vector<16x16xf32> -> vector<16x16xf32>
    %cst_36 = arith.constant dense<0.000000e+00> : vector<16x8xf32>
    %49 = tpu.matmul %40, %46, %cst_36 {dimension_numbers = #tpu.dot_dimension_numbers<[1], [0], [0], [1], [0, 0, 1, 1], [], []>} : vector<16x24xbf16>, vector<24x8xbf16>, vector<16x8xf32> -> vector<16x8xf32>
    %50 = vector.shape_cast %48 : vector<16x16xf32> to vector<2x8x16xf32>
    %cst_37 = arith.constant dense<0xFF800000> : vector<2x16xf32>
    %51 = vector.multi_reduction <maximumf>, %50, %cst_37 [1] : vector<2x8x16xf32> to vector<2x16xf32>
    %52 = vector.shape_cast %51 : vector<2x16xf32> to vector<2x1x16xf32>
    %53 = vector.broadcast %52 : vector<2x1x16xf32> to vector<2x8x16xf32>
    %54 = arith.subf %50, %53 : vector<2x8x16xf32>
    %55 = math.exp %54 : vector<2x8x16xf32>
    %cst_38 = arith.constant dense<0.000000e+00> : vector<2x16xf32>
    %56 = vector.multi_reduction <add>, %55, %cst_38 [1] : vector<2x8x16xf32> to vector<2x16xf32>
    %57 = vector.shape_cast %56 : vector<2x16xf32> to vector<2x1x16xf32>
    %58 = vector.broadcast %57 : vector<2x1x16xf32> to vector<2x8x16xf32>
    %59 = arith.divf %55, %58 : vector<2x8x16xf32>
    %60 = vector.shape_cast %49 : vector<16x8xf32> to vector<2x8x8xf32>
    %61 = tpu.transpose %59, [0, 2, 1] : vector<2x8x16xf32> -> vector<2x16x8xf32>
    %62 = arith.truncf %61 : vector<2x16x8xf32> to vector<2x16x8xbf16>
    %63 = arith.truncf %60 : vector<2x8x8xf32> to vector<2x8x8xbf16>
    "tpu.trace_start"() <{level = 10 : i32, message = "bkn,bnv->bkv"}> : () -> ()
    %cst_39 = arith.constant dense<0.000000e+00> : vector<2x16x8xf32>
    %64 = tpu.matmul %62, %63, %cst_39 {dimension_numbers = #tpu.dot_dimension_numbers<[2], [1], [1], [2], [0, 0, 0, 1, 1, 2], [0], [0]>} : vector<2x16x8xbf16>, vector<2x8x8xbf16>, vector<2x16x8xf32> -> vector<2x16x8xf32>
    "tpu.trace_stop"() : () -> ()
    %65 = arith.truncf %64 : vector<2x16x8xf32> to vector<2x16x8xbf16>
    %cst_40 = arith.constant 0.000000e+00 : bf16
    %66 = vector.broadcast %cst_40 : bf16 to vector<2x16x8xbf16>
    %67 = tpu.concatenate %65, %66, %66 in 2 : vector<2x16x8xbf16>, vector<2x16x8xbf16>, vector<2x16x8xbf16> -> vector<2x16x24xbf16>
    %68 = tpu.concatenate %66, %65, %66 in 2 : vector<2x16x8xbf16>, vector<2x16x8xbf16>, vector<2x16x8xbf16> -> vector<2x16x24xbf16>
    %69 = tpu.concatenate %66, %66, %65 in 2 : vector<2x16x8xbf16>, vector<2x16x8xbf16>, vector<2x16x8xbf16> -> vector<2x16x24xbf16>
    %70 = tpu.concatenate %67, %68, %69 in 1 : vector<2x16x24xbf16>, vector<2x16x24xbf16>, vector<2x16x24xbf16> -> vector<2x48x24xbf16>
    %71 = vector.shape_cast %47 : vector<16x48xf32> to vector<2x8x48xf32>
    %72 = arith.truncf %71 : vector<2x8x48xf32> to vector<2x8x48xbf16>
    "tpu.trace_start"() <{level = 10 : i32, message = "bnk,bkv->bnv"}> : () -> ()
    %cst_41 = arith.constant dense<0.000000e+00> : vector<2x8x24xf32>
    %73 = tpu.matmul %72, %70, %cst_41 {dimension_numbers = #tpu.dot_dimension_numbers<[2], [1], [1], [2], [0, 0, 0, 1, 1, 2], [0], [0]>} : vector<2x8x48xbf16>, vector<2x48x24xbf16>, vector<2x8x24xf32> -> vector<2x8x24xf32>
    "tpu.trace_stop"() : () -> ()
    %74 = arith.truncf %73 : vector<2x8x24xf32> to vector<2x8x24xbf16>
    %c0_42 = arith.constant 0 : index
    %c16 = arith.constant 16 : index
    %c0_43 = arith.constant 0 : index
    %75 = vector.load %arg6[%c0_42, %c16, %c0_43] : memref<2x40x24xbf16, #tpu.memory_space<vmem>>, vector<2x8x24xbf16>
    tpu.vector_store %arg6[%c0_42, %c16, %c0_43], %74 {strides = array<i32>} : memref<2x40x24xbf16, #tpu.memory_space<vmem>>, vector<2x8x24xbf16>,
    %76 = vector.shape_cast %74 : vector<2x8x24xbf16> to vector<16x24xbf16>
    %c2 = arith.constant 2 : index
    %c0_44 = arith.constant 0 : index
    %c0_45 = arith.constant 0 : index
    %77 = vector.load %arg3[%c2, %c0_44, %c0_45] : memref<4x24x48xbf16, #tpu.memory_space<vmem>>, vector<1x24x48xbf16>
    %78 = vector.shape_cast %77 : vector<1x24x48xbf16> to vector<24x48xbf16>
    %c2_46 = arith.constant 2 : index
    %c0_47 = arith.constant 0 : index
    %c0_48 = arith.constant 0 : index
    %79 = vector.load %arg4[%c2_46, %c0_47, %c0_48] : memref<4x24x16xbf16, #tpu.memory_space<vmem>>, vector<1x24x16xbf16>
    %80 = vector.shape_cast %79 : vector<1x24x16xbf16> to vector<24x16xbf16>
    %c2_49 = arith.constant 2 : index
    %c0_50 = arith.constant 0 : index
    %c0_51 = arith.constant 0 : index
    %81 = vector.load %arg5[%c2_49, %c0_50, %c0_51] : memref<4x24x8xbf16, #tpu.memory_space<vmem>>, vector<1x24x8xbf16>
    %82 = vector.shape_cast %81 : vector<1x24x8xbf16> to vector<24x8xbf16>
    %cst_52 = arith.constant dense<0.000000e+00> : vector<16x48xf32>
    %83 = tpu.matmul %40, %78, %cst_52 {dimension_numbers = #tpu.dot_dimension_numbers<[1], [0], [0], [1], [0, 0, 1, 1], [], []>} : vector<16x24xbf16>, vector<24x48xbf16>, vector<16x48xf32> -> vector<16x48xf32>
    %cst_53 = arith.constant dense<0.000000e+00> : vector<16x16xf32>
    %84 = tpu.matmul %76, %80, %cst_53 {dimension_numbers = #tpu.dot_dimension_numbers<[1], [0], [0], [1], [0, 0, 1, 1], [], []>} : vector<16x24xbf16>, vector<24x16xbf16>, vector<16x16xf32> -> vector<16x16xf32>
    %cst_54 = arith.constant dense<0.000000e+00> : vector<16x8xf32>
    %85 = tpu.matmul %76, %82, %cst_54 {dimension_numbers = #tpu.dot_dimension_numbers<[1], [0], [0], [1], [0, 0, 1, 1], [], []>} : vector<16x24xbf16>, vector<24x8xbf16>, vector<16x8xf32> -> vector<16x8xf32>
    %86 = vector.shape_cast %84 : vector<16x16xf32> to vector<2x8x16xf32>
    %cst_55 = arith.constant dense<0xFF800000> : vector<2x16xf32>
    %87 = vector.multi_reduction <maximumf>, %86, %cst_55 [1] : vector<2x8x16xf32> to vector<2x16xf32>
    %88 = vector.shape_cast %87 : vector<2x16xf32> to vector<2x1x16xf32>
    %89 = vector.broadcast %88 : vector<2x1x16xf32> to vector<2x8x16xf32>
    %90 = arith.subf %86, %89 : vector<2x8x16xf32>
    %91 = math.exp %90 : vector<2x8x16xf32>
    %cst_56 = arith.constant dense<0.000000e+00> : vector<2x16xf32>
    %92 = vector.multi_reduction <add>, %91, %cst_56 [1] : vector<2x8x16xf32> to vector<2x16xf32>
    %93 = vector.shape_cast %92 : vector<2x16xf32> to vector<2x1x16xf32>
    %94 = vector.broadcast %93 : vector<2x1x16xf32> to vector<2x8x16xf32>
    %95 = arith.divf %91, %94 : vector<2x8x16xf32>
    %96 = vector.shape_cast %85 : vector<16x8xf32> to vector<2x8x8xf32>
    %97 = tpu.transpose %95, [0, 2, 1] : vector<2x8x16xf32> -> vector<2x16x8xf32>
    %98 = arith.truncf %97 : vector<2x16x8xf32> to vector<2x16x8xbf16>
    %99 = arith.truncf %96 : vector<2x8x8xf32> to vector<2x8x8xbf16>
    "tpu.trace_start"() <{level = 10 : i32, message = "bkn,bnv->bkv"}> : () -> ()
    %cst_57 = arith.constant dense<0.000000e+00> : vector<2x16x8xf32>
    %100 = tpu.matmul %98, %99, %cst_57 {dimension_numbers = #tpu.dot_dimension_numbers<[2], [1], [1], [2], [0, 0, 0, 1, 1, 2], [0], [0]>} : vector<2x16x8xbf16>, vector<2x8x8xbf16>, vector<2x16x8xf32> -> vector<2x16x8xf32>
    "tpu.trace_stop"() : () -> ()
    %101 = arith.truncf %100 : vector<2x16x8xf32> to vector<2x16x8xbf16>
    %cst_58 = arith.constant 0.000000e+00 : bf16
    %102 = vector.broadcast %cst_58 : bf16 to vector<2x16x8xbf16>
    %103 = tpu.concatenate %101, %102, %102 in 2 : vector<2x16x8xbf16>, vector<2x16x8xbf16>, vector<2x16x8xbf16> -> vector<2x16x24xbf16>
    %104 = tpu.concatenate %102, %101, %102 in 2 : vector<2x16x8xbf16>, vector<2x16x8xbf16>, vector<2x16x8xbf16> -> vector<2x16x24xbf16>
    %105 = tpu.concatenate %102, %102, %101 in 2 : vector<2x16x8xbf16>, vector<2x16x8xbf16>, vector<2x16x8xbf16> -> vector<2x16x24xbf16>
    %106 = tpu.concatenate %103, %104, %105 in 1 : vector<2x16x24xbf16>, vector<2x16x24xbf16>, vector<2x16x24xbf16> -> vector<2x48x24xbf16>
    %107 = vector.shape_cast %83 : vector<16x48xf32> to vector<2x8x48xf32>
    %108 = arith.truncf %107 : vector<2x8x48xf32> to vector<2x8x48xbf16>
    "tpu.trace_start"() <{level = 10 : i32, message = "bnk,bkv->bnv"}> : () -> ()
    %cst_59 = arith.constant dense<0.000000e+00> : vector<2x8x24xf32>
    %109 = tpu.matmul %108, %106, %cst_59 {dimension_numbers = #tpu.dot_dimension_numbers<[2], [1], [1], [2], [0, 0, 0, 1, 1, 2], [0], [0]>} : vector<2x8x48xbf16>, vector<2x48x24xbf16>, vector<2x8x24xf32> -> vector<2x8x24xf32>
    "tpu.trace_stop"() : () -> ()
    %110 = arith.truncf %109 : vector<2x8x24xf32> to vector<2x8x24xbf16>
    %c0_60 = arith.constant 0 : index
    %c24 = arith.constant 24 : index
    %c0_61 = arith.constant 0 : index
    %111 = vector.load %arg6[%c0_60, %c24, %c0_61] : memref<2x40x24xbf16, #tpu.memory_space<vmem>>, vector<2x8x24xbf16>
    tpu.vector_store %arg6[%c0_60, %c24, %c0_61], %110 {strides = array<i32>} : memref<2x40x24xbf16, #tpu.memory_space<vmem>>, vector<2x8x24xbf16>,
    %112 = vector.shape_cast %110 : vector<2x8x24xbf16> to vector<16x24xbf16>
    %c3 = arith.constant 3 : index
    %c0_62 = arith.constant 0 : index
    %c0_63 = arith.constant 0 : index
    %113 = vector.load %arg3[%c3, %c0_62, %c0_63] : memref<4x24x48xbf16, #tpu.memory_space<vmem>>, vector<1x24x48xbf16>
    %114 = vector.shape_cast %113 : vector<1x24x48xbf16> to vector<24x48xbf16>
    %c3_64 = arith.constant 3 : index
    %c0_65 = arith.constant 0 : index
    %c0_66 = arith.constant 0 : index
    %115 = vector.load %arg4[%c3_64, %c0_65, %c0_66] : memref<4x24x16xbf16, #tpu.memory_space<vmem>>, vector<1x24x16xbf16>
    %116 = vector.shape_cast %115 : vector<1x24x16xbf16> to vector<24x16xbf16>
    %c3_67 = arith.constant 3 : index
    %c0_68 = arith.constant 0 : index
    %c0_69 = arith.constant 0 : index
    %117 = vector.load %arg5[%c3_67, %c0_68, %c0_69] : memref<4x24x8xbf16, #tpu.memory_space<vmem>>, vector<1x24x8xbf16>
    %118 = vector.shape_cast %117 : vector<1x24x8xbf16> to vector<24x8xbf16>
    %cst_70 = arith.constant dense<0.000000e+00> : vector<16x48xf32>
    %119 = tpu.matmul %40, %114, %cst_70 {dimension_numbers = #tpu.dot_dimension_numbers<[1], [0], [0], [1], [0, 0, 1, 1], [], []>} : vector<16x24xbf16>, vector<24x48xbf16>, vector<16x48xf32> -> vector<16x48xf32>
    %cst_71 = arith.constant dense<0.000000e+00> : vector<16x16xf32>
    %120 = tpu.matmul %112, %116, %cst_71 {dimension_numbers = #tpu.dot_dimension_numbers<[1], [0], [0], [1], [0, 0, 1, 1], [], []>} : vector<16x24xbf16>, vector<24x16xbf16>, vector<16x16xf32> -> vector<16x16xf32>
    %cst_72 = arith.constant dense<0.000000e+00> : vector<16x8xf32>
    %121 = tpu.matmul %112, %118, %cst_72 {dimension_numbers = #tpu.dot_dimension_numbers<[1], [0], [0], [1], [0, 0, 1, 1], [], []>} : vector<16x24xbf16>, vector<24x8xbf16>, vector<16x8xf32> -> vector<16x8xf32>
    %122 = vector.shape_cast %120 : vector<16x16xf32> to vector<2x8x16xf32>
    %cst_73 = arith.constant dense<0xFF800000> : vector<2x16xf32>
    %123 = vector.multi_reduction <maximumf>, %122, %cst_73 [1] : vector<2x8x16xf32> to vector<2x16xf32>
    %124 = vector.shape_cast %123 : vector<2x16xf32> to vector<2x1x16xf32>
    %125 = vector.broadcast %124 : vector<2x1x16xf32> to vector<2x8x16xf32>
    %126 = arith.subf %122, %125 : vector<2x8x16xf32>
    %127 = math.exp %126 : vector<2x8x16xf32>
    %cst_74 = arith.constant dense<0.000000e+00> : vector<2x16xf32>
    %128 = vector.multi_reduction <add>, %127, %cst_74 [1] : vector<2x8x16xf32> to vector<2x16xf32>
    %129 = vector.shape_cast %128 : vector<2x16xf32> to vector<2x1x16xf32>
    %130 = vector.broadcast %129 : vector<2x1x16xf32> to vector<2x8x16xf32>
    %131 = arith.divf %127, %130 : vector<2x8x16xf32>
    %132 = vector.shape_cast %121 : vector<16x8xf32> to vector<2x8x8xf32>
    %133 = tpu.transpose %131, [0, 2, 1] : vector<2x8x16xf32> -> vector<2x16x8xf32>
    %134 = arith.truncf %133 : vector<2x16x8xf32> to vector<2x16x8xbf16>
    %135 = arith.truncf %132 : vector<2x8x8xf32> to vector<2x8x8xbf16>
    "tpu.trace_start"() <{level = 10 : i32, message = "bkn,bnv->bkv"}> : () -> ()
    %cst_75 = arith.constant dense<0.000000e+00> : vector<2x16x8xf32>
    %136 = tpu.matmul %134, %135, %cst_75 {dimension_numbers = #tpu.dot_dimension_numbers<[2], [1], [1], [2], [0, 0, 0, 1, 1, 2], [0], [0]>} : vector<2x16x8xbf16>, vector<2x8x8xbf16>, vector<2x16x8xf32> -> vector<2x16x8xf32>
    "tpu.trace_stop"() : () -> ()
    %137 = arith.truncf %136 : vector<2x16x8xf32> to vector<2x16x8xbf16>
    %cst_76 = arith.constant 0.000000e+00 : bf16
    %138 = vector.broadcast %cst_76 : bf16 to vector<2x16x8xbf16>
    %139 = tpu.concatenate %137, %138, %138 in 2 : vector<2x16x8xbf16>, vector<2x16x8xbf16>, vector<2x16x8xbf16> -> vector<2x16x24xbf16>
    %140 = tpu.concatenate %138, %137, %138 in 2 : vector<2x16x8xbf16>, vector<2x16x8xbf16>, vector<2x16x8xbf16> -> vector<2x16x24xbf16>
    %141 = tpu.concatenate %138, %138, %137 in 2 : vector<2x16x8xbf16>, vector<2x16x8xbf16>, vector<2x16x8xbf16> -> vector<2x16x24xbf16>
    %142 = tpu.concatenate %139, %140, %141 in 1 : vector<2x16x24xbf16>, vector<2x16x24xbf16>, vector<2x16x24xbf16> -> vector<2x48x24xbf16>
    %143 = vector.shape_cast %119 : vector<16x48xf32> to vector<2x8x48xf32>
    %144 = arith.truncf %143 : vector<2x8x48xf32> to vector<2x8x48xbf16>
    "tpu.trace_start"() <{level = 10 : i32, message = "bnk,bkv->bnv"}> : () -> ()
    %cst_77 = arith.constant dense<0.000000e+00> : vector<2x8x24xf32>
    %145 = tpu.matmul %144, %142, %cst_77 {dimension_numbers = #tpu.dot_dimension_numbers<[2], [1], [1], [2], [0, 0, 0, 1, 1, 2], [0], [0]>} : vector<2x8x48xbf16>, vector<2x48x24xbf16>, vector<2x8x24xf32> -> vector<2x8x24xf32>
    "tpu.trace_stop"() : () -> ()
    %146 = arith.truncf %145 : vector<2x8x24xf32> to vector<2x8x24xbf16>
    %c0_78 = arith.constant 0 : index
    %c32 = arith.constant 32 : index
    %c0_79 = arith.constant 0 : index
    %147 = vector.load %arg6[%c0_78, %c32, %c0_79] : memref<2x40x24xbf16, #tpu.memory_space<vmem>>, vector<2x8x24xbf16>
    tpu.vector_store %arg6[%c0_78, %c32, %c0_79], %146 {strides = array<i32>} : memref<2x40x24xbf16, #tpu.memory_space<vmem>>, vector<2x8x24xbf16>,
    return
  }
  func.func @transform_0(%arg0: i32) -> (i32, i32, i32) {
    %c0_i32 = arith.constant 0 : i32
    %c0_i32_0 = arith.constant 0 : i32
    %c0_i32_1 = arith.constant 0 : i32
    return %arg0, %c0_i32, %c0_i32_0 : i32, i32, i32
  }
  func.func @transform_1(%arg0: i32) -> (i32, i32, i32) {
    %c0_i32 = arith.constant 0 : i32
    %c0_i32_0 = arith.constant 0 : i32
    %c0_i32_1 = arith.constant 0 : i32
    return %arg0, %c0_i32, %c0_i32_0 : i32, i32, i32
  }
  func.func @transform_2(%arg0: i32) -> (i32, i32, i32) {
    %c0_i32 = arith.constant 0 : i32
    %c0_i32_0 = arith.constant 0 : i32
    %c0_i32_1 = arith.constant 0 : i32
    %c0_i32_2 = arith.constant 0 : i32
    return %c0_i32, %c0_i32_0, %c0_i32_1 : i32, i32, i32
  }
  func.func @transform_3(%arg0: i32) -> (i32, i32, i32) {
    %c0_i32 = arith.constant 0 : i32
    %c0_i32_0 = arith.constant 0 : i32
    %c0_i32_1 = arith.constant 0 : i32
    %c0_i32_2 = arith.constant 0 : i32
    return %c0_i32, %c0_i32_0, %c0_i32_1 : i32, i32, i32
  }
  func.func @transform_4(%arg0: i32) -> (i32, i32, i32) {
    %c0_i32 = arith.constant 0 : i32
    %c0_i32_0 = arith.constant 0 : i32
    %c0_i32_1 = arith.constant 0 : i32
    %c0_i32_2 = arith.constant 0 : i32
    return %c0_i32, %c0_i32_0, %c0_i32_1 : i32, i32, i32
  }
  func.func @transform_5(%arg0: i32) -> (i32, i32, i32) {
    %c0_i32 = arith.constant 0 : i32
    %c0_i32_0 = arith.constant 0 : i32
    %c0_i32_1 = arith.constant 0 : i32
    return %arg0, %c0_i32, %c0_i32_0 : i32, i32, i32
  }
}

</mosaic_0001>

<llo_original>
// kernel: tpu_custom_call.1
$region0: #{tpu_custom_call.1}
  #allocation0 [shape = 'u32[]', space=smem, size = 0x4, offset = 0x4, fixed_abs, tag = 'smem constant byte address 0x4 - core index']
  #allocation1 [shape = 'u32[144,128]{1,0:T(1,128)}', space=vmem, size = 0x12000, scoped, tag = 'internal scratch']
  %s0 = inlined_call_operand.vmem [shape: bf16[2,8,24], index: 0, kind: input, shape index: {}]
  %s1 = inlined_call_operand.vmem [shape: bf16[2,8,24], index: 1, kind: input, shape index: {}]
  %s2 = inlined_call_operand.vmem [shape: bf16[4,24,48], index: 2, kind: input, shape index: {}]
  %s3 = inlined_call_operand.vmem [shape: bf16[4,24,16], index: 3, kind: input, shape index: {}]
  %s4 = inlined_call_operand.vmem [shape: bf16[4,24,8], index: 4, kind: input, shape index: {}]
  %s5 = inlined_call_operand.vmem [shape: bf16[2,40,24], index: 5, kind: output, shape index: {}]
  %s6 = sld [smem:[#allocation0]]
  $region30: #{tpu_custom_call.1} parent=0
    _
  %s8 = ssub.s32 1, %s6
  %s9 = scalar_select 0, %s8, %s6
  // Predicated region
  $region2: #{tpu_custom_call.1} parent=0 // pred_check
    _
  $region3: #{tpu_custom_call.1} parent=0 // pred_check_branch
    %11 = sbr.rel (0) target = $region5
  $region4: #{tpu_custom_call.1} parent=0 // pred_region
    _
  $region5: #{tpu_custom_call.1} parent=0 // pred_fallthru
    _
  // Predicated region
  $region6: #{tpu_custom_call.1} parent=0 // pred_check
    _
  $region7: #{tpu_custom_call.1} parent=0 // pred_check_branch
    %13 = sbr.rel (0) target = $region9
  $region8: #{tpu_custom_call.1} parent=0 // pred_region
    _
  $region9: #{tpu_custom_call.1} parent=0 // pred_fallthru
    _
  // Predicated region
  $region10: #{tpu_custom_call.1} parent=0 // pred_check
    _
  $region11: #{tpu_custom_call.1} parent=0 // pred_check_branch
    %15 = sbr.rel (0) target = $region13
  $region12: #{tpu_custom_call.1} parent=0 // pred_region
    _
  $region13: #{tpu_custom_call.1} parent=0 // pred_fallthru
    _
  // Predicated region
  $region14: #{tpu_custom_call.1} parent=0 // pred_check
    _
  $region15: #{tpu_custom_call.1} parent=0 // pred_check_branch
    %17 = sbr.rel (0) target = $region17
  $region16: #{tpu_custom_call.1} parent=0 // pred_region
    _
  $region17: #{tpu_custom_call.1} parent=0 // pred_fallthru
    _
  // Predicated region
  $region18: #{tpu_custom_call.1} parent=0 // pred_check
    _
  $region19: #{tpu_custom_call.1} parent=0 // pred_check_branch
    %19 = sbr.rel (0) target = $region21
  $region20: #{tpu_custom_call.1} parent=0 // pred_region
    _
  $region21: #{tpu_custom_call.1} parent=0 // pred_fallthru
    _
  %v21 = vld [vmem:[%s0] sm:$0xf]
  %v22 = vld [vmem:[%s0 + $0x4] sm:$0xf]
  %v23 = vld [vmem:[%s1] sm:$0xf]
  %v24 = vld [vmem:[%s1 + $0x4] sm:$0xf]
  %vm25 = vcmask 191488
  %26 = vst.msk [vmem:[%s5] sm:$0xf] %vm25, %v21
  %27 = vst.msk [vmem:[%s5 + $0x14] sm:$0xf] %vm25, %v22
  %v28 = vld [vmem:[%s2] sm:$0xf]
  %v29 = vld [vmem:[%s2 + $0x4] sm:$0xf]
  %v30 = vld [vmem:[%s2 + $0x8] sm:$0xf]
  %v31 = vld [vmem:[%s3] sm:$0xf]
  %v32 = vld [vmem:[%s3 + $0x4] sm:$0xf]
  %v33 = vld [vmem:[%s3 + $0x8] sm:$0xf]
  %v34 = vld [vmem:[%s4] sm:$0xf]
  %v35 = vld [vmem:[%s4 + $0x4] sm:$0xf]
  %v36 = vld [vmem:[%s4 + $0x8] sm:$0xf]
  %v39 = vunpack.c.l.b16 %v21
  %v40 = vunpack.c.l.b16 %v22
  %v41 = vpack.c.b16 %v40, %v39
  %v45 = vunpack.c.l.b16 %v28
  %v46 = vunpack.c.l.b16 %v29
  %v47 = vunpack.c.l.b16 %v30
  %v48 = vpack.c.b16 %v46, %v45
  %v49 = vpack.c.b16 %v47, %v47
  %vm51 = vcmask 195584
  %v53 = vsel %vm51, %v41, 0
  %vm55 = vcmask 1043456
  %v57 = vsel %vm55, %v49, 0
  %59 = vmatprep.subr.bf16.mxu0 0
  %60 = vmatpush1.bf16.msra.mxu0 %v48
  %61 = vmatprep.subr.bf16.mxu0 0
  %62 = vmatpush1.bf16.msra.mxu0 %v57
  %63 = vmatprep.subr.bf16.mxu0 0
  %64 = vmatpush1.bf16.msra.mxu0 0
  %65 = vmatprep.subr.bf16.mxu0 0
  %66 = vmatpush1.bf16.msra.mxu0 0
  %67 = vmatprep.subr.bf16.mxu0 0
  %68 = vmatpush1.bf16.msra.mxu0 0
  %69 = vmatprep.subr.bf16.mxu0 0
  %70 = vmatpush1.bf16.msra.mxu0 0
  %71 = vmatprep.subr.bf16.mxu0 0
  %72 = vmatpush1.bf16.msra.mxu0 0
  %73 = vmatprep.subr.bf16.mxu0 0
  %74 = vmatpush1.bf16.msra.mxu0 0
  %75 = vmatprep.subr.bf16.mxu0 0
  %76 = vmatpush1.bf16.msra.mxu0 0
  %77 = vmatprep.subr.bf16.mxu0 0
  %78 = vmatpush1.bf16.msra.mxu0 0
  %79 = vmatprep.subr.bf16.mxu0 0
  %80 = vmatpush1.bf16.msra.mxu0 0
  %81 = vmatprep.subr.bf16.mxu0 0
  %82 = vmatpush1.bf16.msra.mxu0 0
  %83 = vmatprep.subr.bf16.mxu0 0
  %84 = vmatpush1.bf16.msra.mxu0 0
  %85 = vmatprep.subr.bf16.mxu0 0
  %86 = vmatpush1.bf16.msra.mxu0 0
  %87 = vmatprep.subr.bf16.mxu0 0
  %88 = vmatpush1.bf16.msra.mxu0 0
  %89 = vmatprep.subr.bf16.mxu0 0
  %90 = vmatpush1.bf16.msra.mxu0 0
  %91 = vmatprep.mubr.bf16.mxu0 0
  %92 = vmatmul.mubr.bf16.gmra.mrb[0].mxu0 %v53
  %v93 = vpop.f32.mrb[0].mxu0
  %v94 = vadd.f32 0.0, %v93
  %v95 = vpop.f32.mrb[0].mxu0
  %v96 = vpop.f32.mrb[0].mxu0
  %v97 = vadd.f32 0.0, %v96
  %v98 = vpop.f32.mrb[0].mxu0
  %99 = vdwg.mxu0
  %v102 = vunpack.c.l.b16 %v23
  %v103 = vunpack.c.l.b16 %v24
  %v104 = vpack.c.b16 %v103, %v102
  %v108 = vunpack.c.l.b16 %v31
  %v109 = vunpack.c.l.b16 %v32
  %v110 = vunpack.c.l.b16 %v33
  %v111 = vpack.c.b16 %v109, %v108
  %v112 = vpack.c.b16 %v110, %v110
  %v115 = vsel %vm51, %v104, 0
  %v118 = vsel %vm55, %v112, 0
  %120 = vmatprep.subr.bf16.mxu0 0
  %121 = vmatpush1.bf16.msra.mxu0 %v111
  %122 = vmatprep.subr.bf16.mxu0 0
  %123 = vmatpush1.bf16.msra.mxu0 %v118
  %124 = vmatprep.subr.bf16.mxu0 0
  %125 = vmatpush1.bf16.msra.mxu0 0
  %126 = vmatprep.subr.bf16.mxu0 0
  %127 = vmatpush1.bf16.msra.mxu0 0
  %128 = vmatprep.subr.bf16.mxu0 0
  %129 = vmatpush1.bf16.msra.mxu0 0
  %130 = vmatprep.subr.bf16.mxu0 0
  %131 = vmatpush1.bf16.msra.mxu0 0
  %132 = vmatprep.subr.bf16.mxu0 0
  %133 = vmatpush1.bf16.msra.mxu0 0
  %134 = vmatprep.subr.bf16.mxu0 0
  %135 = vmatpush1.bf16.msra.mxu0 0
  %136 = vmatprep.subr.bf16.mxu0 0
  %137 = vmatpush1.bf16.msra.mxu0 0
  %138 = vmatprep.subr.bf16.mxu0 0
  %139 = vmatpush1.bf16.msra.mxu0 0
  %140 = vmatprep.subr.bf16.mxu0 0
  %141 = vmatpush1.bf16.msra.mxu0 0
  %142 = vmatprep.subr.bf16.mxu0 0
  %143 = vmatpush1.bf16.msra.mxu0 0
  %144 = vmatprep.subr.bf16.mxu0 0
  %145 = vmatpush1.bf16.msra.mxu0 0
  %146 = vmatprep.subr.bf16.mxu0 0
  %147 = vmatpush1.bf16.msra.mxu0 0
  %148 = vmatprep.subr.bf16.mxu0 0
  %149 = vmatpush1.bf16.msra.mxu0 0
  %150 = vmatprep.subr.bf16.mxu0 0
  %151 = vmatpush1.bf16.msra.mxu0 0
  %152 = vmatprep.mubr.bf16.mxu0 0
  %153 = vmatmul.mubr.bf16.gmra.mrb[0].mxu0 %v115
  %v154 = vpop.f32.mrb[0].mxu0
  %v155 = vadd.f32 0.0, %v154
  %v156 = vpop.f32.mrb[0].mxu0
  %v157 = vpop.f32.mrb[0].mxu0
  %v158 = vadd.f32 0.0, %v157
  %v159 = vpop.f32.mrb[0].mxu0
  %160 = vdwg.mxu0
  %v164 = vunpack.c.l.b16 %v34
  %v165 = vunpack.c.l.b16 %v35
  %v166 = vunpack.c.l.b16 %v36
  %v167 = vpack.c.b16 %v165, %v164
  %v168 = vpack.c.b16 %v166, %v166
  %v171 = vsel %vm55, %v168, 0
  %173 = vmatprep.subr.bf16.mxu0 0
  %174 = vmatpush1.bf16.msra.mxu0 %v167
  %175 = vmatprep.subr.bf16.mxu0 0
  %176 = vmatpush1.bf16.msra.mxu0 %v171
  %177 = vmatprep.subr.bf16.mxu0 0
  %178 = vmatpush1.bf16.msra.mxu0 0
  %179 = vmatprep.subr.bf16.mxu0 0
  %180 = vmatpush1.bf16.msra.mxu0 0
  %181 = vmatprep.subr.bf16.mxu0 0
  %182 = vmatpush1.bf16.msra.mxu0 0
  %183 = vmatprep.subr.bf16.mxu0 0
  %184 = vmatpush1.bf16.msra.mxu0 0
  %185 = vmatprep.subr.bf16.mxu0 0
  %186 = vmatpush1.bf16.msra.mxu0 0
  %187 = vmatprep.subr.bf16.mxu0 0
  %188 = vmatpush1.bf16.msra.mxu0 0
  %189 = vmatprep.subr.bf16.mxu0 0
  %190 = vmatpush1.bf16.msra.mxu0 0
  %191 = vmatprep.subr.bf16.mxu0 0
  %192 = vmatpush1.bf16.msra.mxu0 0
  %193 = vmatprep.subr.bf16.mxu0 0
  %194 = vmatpush1.bf16.msra.mxu0 0
  %195 = vmatprep.subr.bf16.mxu0 0
  %196 = vmatpush1.bf16.msra.mxu0 0
  %197 = vmatprep.subr.bf16.mxu0 0
  %198 = vmatpush1.bf16.msra.mxu0 0
  %199 = vmatprep.subr.bf16.mxu0 0
  %200 = vmatpush1.bf16.msra.mxu0 0
  %201 = vmatprep.subr.bf16.mxu0 0
  %202 = vmatpush1.bf16.msra.mxu0 0
  %203 = vmatprep.subr.bf16.mxu0 0
  %204 = vmatpush1.bf16.msra.mxu0 0
  %205 = vmatprep.mubr.bf16.mxu0 0
  %206 = vmatmul.mubr.bf16.gmra.mrb[0].mxu0 %v115
  %v207 = vpop.f32.mrb[0].mxu0
  %v208 = vadd.f32 0.0, %v207
  %v209 = vpop.f32.mrb[0].mxu0
  %v210 = vpop.f32.mrb[0].mxu0
  %v211 = vadd.f32 0.0, %v210
  %v212 = vpop.f32.mrb[0].mxu0
  %213 = vdwg.mxu0
  %vm214 = vcmask 130048
  %v215 = vsel %vm214, %v155, -inf
  %v216 = vrot.slane %v215, 4
  %v217 = vmax.f32 %v215, %v216
  %v218 = vrot.slane %v217, 2
  %v219 = vmax.f32 %v217, %v218
  %v220 = vrot.slane %v219, 1
  %v221 = vmax.f32 %v219, %v220
  %v222 = vsel %vm214, %v158, -inf
  %v223 = vrot.slane %v222, 4
  %v224 = vmax.f32 %v222, %v223
  %v225 = vrot.slane %v224, 2
  %v226 = vmax.f32 %v224, %v225
  %v227 = vrot.slane %v226, 1
  %v228 = vmax.f32 %v226, %v227
  %v229 = vsub.f32 %v155, %v221
  %v230 = vsub.f32 %v158, %v228
  %v231 = vmul.f32 %v229, 1.442695
  %v232 = vpow.pop %v231
  %v233 = vmul.f32 %v230, 1.442695
  %v234 = vpow.pop %v233
  %v235 = vsel %vm214, %v232, 0.0
  %v236 = vrot.slane %v235, 4
  %v237 = vadd.f32 %v235, %v236
  %v238 = vrot.slane %v237, 2
  %v239 = vadd.f32 %v237, %v238
  %v240 = vrot.slane %v239, 1
  %v241 = vadd.f32 %v239, %v240
  %v242 = vsel %vm214, %v234, 0.0
  %v243 = vrot.slane %v242, 4
  %v244 = vadd.f32 %v242, %v243
  %v245 = vrot.slane %v244, 2
  %v246 = vadd.f32 %v244, %v245
  %v247 = vrot.slane %v246, 1
  %v248 = vadd.f32 %v246, %v247
  %v249 = vrcp.pop %v241
  %v250 = vmul.f32 %v232, %v249
  %v251 = vrcp.pop %v248
  %v252 = vmul.f32 %v234, %v251
  %253 = vxpose.xlu0.b32.start [1/16] %v250, 128
  %254 = vxpose.xlu0.b32.cont [2/16] 0.0, 128
  %255 = vxpose.xlu0.b32.cont [3/16] 0.0, 128
  %256 = vxpose.xlu0.b32.cont [4/16] 0.0, 128
  %257 = vxpose.xlu0.b32.cont [5/16] 0.0, 128
  %258 = vxpose.xlu0.b32.cont [6/16] 0.0, 128
  %259 = vxpose.xlu0.b32.cont [7/16] 0.0, 128
  %260 = vxpose.xlu0.b32.cont [8/16] 0.0, 128
  %261 = vxpose.xlu0.b32.cont [9/16] 0.0, 128
  %262 = vxpose.xlu0.b32.cont [10/16] 0.0, 128
  %263 = vxpose.xlu0.b32.cont [11/16] 0.0, 128
  %264 = vxpose.xlu0.b32.cont [12/16] 0.0, 128
  %265 = vxpose.xlu0.b32.cont [13/16] 0.0, 128
  %266 = vxpose.xlu0.b32.cont [14/16] 0.0, 128
  %267 = vxpose.xlu0.b32.cont [15/16] 0.0, 128
  %268 = vxpose.xlu0.b32.end [16/16] 0.0, 128
  %v269 = vpop.trf.xlu0
  %v270 = vpop.trf.xlu0
  %v271 = vpop.trf.xlu0
  %v272 = vpop.trf.xlu0
  %v273 = vpop.trf.xlu0
  %v274 = vpop.trf.xlu0
  %v275 = vpop.trf.xlu0
  %v276 = vpop.trf.xlu0
  %v277 = vpop.trf.xlu0
  %v278 = vpop.trf.xlu0
  %v279 = vpop.trf.xlu0
  %v280 = vpop.trf.xlu0
  %v281 = vpop.trf.xlu0
  %v282 = vpop.trf.xlu0
  %v283 = vpop.trf.xlu0
  %v284 = vpop.trf.xlu0
  %285 = vxpose.xlu0.b32.start [1/16] %v252, 128
  %286 = vxpose.xlu0.b32.cont [2/16] 0.0, 128
  %287 = vxpose.xlu0.b32.cont [3/16] 0.0, 128
  %288 = vxpose.xlu0.b32.cont [4/16] 0.0, 128
  %289 = vxpose.xlu0.b32.cont [5/16] 0.0, 128
  %290 = vxpose.xlu0.b32.cont [6/16] 0.0, 128
  %291 = vxpose.xlu0.b32.cont [7/16] 0.0, 128
  %292 = vxpose.xlu0.b32.cont [8/16] 0.0, 128
  %293 = vxpose.xlu0.b32.cont [9/16] 0.0, 128
  %294 = vxpose.xlu0.b32.cont [10/16] 0.0, 128
  %295 = vxpose.xlu0.b32.cont [11/16] 0.0, 128
  %296 = vxpose.xlu0.b32.cont [12/16] 0.0, 128
  %297 = vxpose.xlu0.b32.cont [13/16] 0.0, 128
  %298 = vxpose.xlu0.b32.cont [14/16] 0.0, 128
  %299 = vxpose.xlu0.b32.cont [15/16] 0.0, 128
  %300 = vxpose.xlu0.b32.end [16/16] 0.0, 128
  %v301 = vpop.trf.xlu0
  %v302 = vpop.trf.xlu0
  %v303 = vpop.trf.xlu0
  %v304 = vpop.trf.xlu0
  %v305 = vpop.trf.xlu0
  %v306 = vpop.trf.xlu0
  %v307 = vpop.trf.xlu0
  %v308 = vpop.trf.xlu0
  %v309 = vpop.trf.xlu0
  %v310 = vpop.trf.xlu0
  %v311 = vpop.trf.xlu0
  %v312 = vpop.trf.xlu0
  %v313 = vpop.trf.xlu0
  %v314 = vpop.trf.xlu0
  %v315 = vpop.trf.xlu0
  %v316 = vpop.trf.xlu0
  %v317 = vpack.c.bf16 %v270, %v269
  %v318 = vpack.c.bf16 %v302, %v301
  %v319 = vpack.c.bf16 %v208, %v208
  %v320 = vpack.c.bf16 %v211, %v211
  %vm321 = vcmask 64512
  %v323 = vsel %vm321, %v317, 0
  %v326 = vsel %vm55, %v319, 0
  %328 = vmatprep.subr.bf16.mxu0 0
  %329 = vmatpush1.bf16.msra.mxu0 %v326
  %330 = vmatprep.subr.bf16.mxu0 0
  %331 = vmatpush1.bf16.msra.mxu0 0
  %332 = vmatprep.subr.bf16.mxu0 0
  %333 = vmatpush1.bf16.msra.mxu0 0
  %334 = vmatprep.subr.bf16.mxu0 0
  %335 = vmatpush1.bf16.msra.mxu0 0
  %336 = vmatprep.subr.bf16.mxu0 0
  %337 = vmatpush1.bf16.msra.mxu0 0
  %338 = vmatprep.subr.bf16.mxu0 0
  %339 = vmatpush1.bf16.msra.mxu0 0
  %340 = vmatprep.subr.bf16.mxu0 0
  %341 = vmatpush1.bf16.msra.mxu0 0
  %342 = vmatprep.subr.bf16.mxu0 0
  %343 = vmatpush1.bf16.msra.mxu0 0
  %344 = vmatprep.subr.bf16.mxu0 0
  %345 = vmatpush1.bf16.msra.mxu0 0
  %346 = vmatprep.subr.bf16.mxu0 0
  %347 = vmatpush1.bf16.msra.mxu0 0
  %348 = vmatprep.subr.bf16.mxu0 0
  %349 = vmatpush1.bf16.msra.mxu0 0
  %350 = vmatprep.subr.bf16.mxu0 0
  %351 = vmatpush1.bf16.msra.mxu0 0
  %352 = vmatprep.subr.bf16.mxu0 0
  %353 = vmatpush1.bf16.msra.mxu0 0
  %354 = vmatprep.subr.bf16.mxu0 0
  %355 = vmatpush1.bf16.msra.mxu0 0
  %356 = vmatprep.subr.bf16.mxu0 0
  %357 = vmatpush1.bf16.msra.mxu0 0
  %358 = vmatprep.subr.bf16.mxu0 0
  %359 = vmatpush1.bf16.msra.mxu0 0
  %360 = vmatprep.mubr.bf16.mxu0 0
  %361 = vmatmul.mubr.bf16.gmra.mrb[0].mxu0 %v323
  %v362 = vpop.f32.mrb[0].mxu0
  %v363 = vadd.f32 0.0, %v362
  %v364 = vpop.f32.mrb[0].mxu0
  %v365 = vpop.f32.mrb[0].mxu0
  %v366 = vadd.f32 0.0, %v365
  %v367 = vpop.f32.mrb[0].mxu0
  %368 = vdwg.mxu0
  %v370 = vsel %vm321, %v318, 0
  %v373 = vsel %vm55, %v320, 0
  %375 = vmatprep.subr.bf16.mxu0 0
  %376 = vmatpush1.bf16.msra.mxu0 %v373
  %377 = vmatprep.subr.bf16.mxu0 0
  %378 = vmatpush1.bf16.msra.mxu0 0
  %379 = vmatprep.subr.bf16.mxu0 0
  %380 = vmatpush1.bf16.msra.mxu0 0
  %381 = vmatprep.subr.bf16.mxu0 0
  %382 = vmatpush1.bf16.msra.mxu0 0
  %383 = vmatprep.subr.bf16.mxu0 0
  %384 = vmatpush1.bf16.msra.mxu0 0
  %385 = vmatprep.subr.bf16.mxu0 0
  %386 = vmatpush1.bf16.msra.mxu0 0
  %387 = vmatprep.subr.bf16.mxu0 0
  %388 = vmatpush1.bf16.msra.mxu0 0
  %389 = vmatprep.subr.bf16.mxu0 0
  %390 = vmatpush1.bf16.msra.mxu0 0
  %391 = vmatprep.subr.bf16.mxu0 0
  %392 = vmatpush1.bf16.msra.mxu0 0
  %393 = vmatprep.subr.bf16.mxu0 0
  %394 = vmatpush1.bf16.msra.mxu0 0
  %395 = vmatprep.subr.bf16.mxu0 0
  %396 = vmatpush1.bf16.msra.mxu0 0
  %397 = vmatprep.subr.bf16.mxu0 0
  %398 = vmatpush1.bf16.msra.mxu0 0
  %399 = vmatprep.subr.bf16.mxu0 0
  %400 = vmatpush1.bf16.msra.mxu0 0
  %401 = vmatprep.subr.bf16.mxu0 0
  %402 = vmatpush1.bf16.msra.mxu0 0
  %403 = vmatprep.subr.bf16.mxu0 0
  %404 = vmatpush1.bf16.msra.mxu0 0
  %405 = vmatprep.subr.bf16.mxu0 0
  %406 = vmatpush1.bf16.msra.mxu0 0
  %407 = vmatprep.mubr.bf16.mxu0 0
  %408 = vmatmul.mubr.bf16.gmra.mrb[0].mxu0 %v370
  %v409 = vpop.f32.mrb[0].mxu0
  %v410 = vadd.f32 0.0, %v409
  %v411 = vpop.f32.mrb[0].mxu0
  %v412 = vpop.f32.mrb[0].mxu0
  %v413 = vadd.f32 0.0, %v412
  %v414 = vpop.f32.mrb[0].mxu0
  %415 = vdwg.mxu0
  %v416 = vpack.c.bf16 %v366, %v363
  %v417 = vpack.c.bf16 %v413, %v410
  %v420 = vsel %vm321, %v416, 0
  %v422 = vsel %vm321, %v417, 0
  %v423 = vsel %vm214, %v420, 0
  %v425 = vsel %vm214, %v422, 0
  %429 = vrot.lane.b32.xlu0 %v416, 8
  %v430 = vpop.permute.xlu0 %429
  %431 = vrot.lane.b32.xlu0 %v417, 8
  %v432 = vpop.permute.xlu0 %431
  %v434 = vsel %vm321, 0, %v430
  %v436 = vsel %vm321, 0, %v432
  %v437 = vsel %vm214, %v434, 0
  %v439 = vsel %vm214, %v436, 0
  %441 = vrot.lane.b32.xlu0 %v416, 16
  %v442 = vpop.permute.xlu0 %441
  %443 = vrot.lane.b32.xlu0 %v417, 16
  %v444 = vpop.permute.xlu0 %443
  %v446 = vsel %vm214, 0, %v442
  %v449 = vsel %vm214, 0, %v444
  %v451 = vpack.c.bf16 %v94, %v94
  %v452 = vpack.c.bf16 %v97, %v97
  %vm453 = vcmask 392192
  %v455 = vsel %vm453, %v451, 0
  %457 = vmatprep.subr.bf16.mxu0 0
  %458 = vmatpush1.bf16.msra.mxu0 %v423
  %459 = vmatprep.subr.bf16.mxu0 0
  %460 = vmatpush1.bf16.msra.mxu0 %v437
  %461 = vmatprep.subr.bf16.mxu0 0
  %462 = vmatpush1.bf16.msra.mxu0 %v446
  %463 = vmatprep.subr.bf16.mxu0 0
  %464 = vmatpush1.bf16.msra.mxu0 0
  %465 = vmatprep.subr.bf16.mxu0 0
  %466 = vmatpush1.bf16.msra.mxu0 0
  %467 = vmatprep.subr.bf16.mxu0 0
  %468 = vmatpush1.bf16.msra.mxu0 0
  %469 = vmatprep.subr.bf16.mxu0 0
  %470 = vmatpush1.bf16.msra.mxu0 0
  %471 = vmatprep.subr.bf16.mxu0 0
  %472 = vmatpush1.bf16.msra.mxu0 0
  %473 = vmatprep.subr.bf16.mxu0 0
  %474 = vmatpush1.bf16.msra.mxu0 0
  %475 = vmatprep.subr.bf16.mxu0 0
  %476 = vmatpush1.bf16.msra.mxu0 0
  %477 = vmatprep.subr.bf16.mxu0 0
  %478 = vmatpush1.bf16.msra.mxu0 0
  %479 = vmatprep.subr.bf16.mxu0 0
  %480 = vmatpush1.bf16.msra.mxu0 0
  %481 = vmatprep.subr.bf16.mxu0 0
  %482 = vmatpush1.bf16.msra.mxu0 0
  %483 = vmatprep.subr.bf16.mxu0 0
  %484 = vmatpush1.bf16.msra.mxu0 0
  %485 = vmatprep.subr.bf16.mxu0 0
  %486 = vmatpush1.bf16.msra.mxu0 0
  %487 = vmatprep.subr.bf16.mxu0 0
  %488 = vmatpush1.bf16.msra.mxu0 0
  %489 = vmatprep.mubr.bf16.mxu0 0
  %490 = vmatmul.mubr.bf16.gmra.mrb[0].mxu0 %v455
  %v491 = vpop.f32.mrb[0].mxu0
  %v492 = vadd.f32 0.0, %v491
  %v493 = vpop.f32.mrb[0].mxu0
  %v494 = vpop.f32.mrb[0].mxu0
  %v495 = vpop.f32.mrb[0].mxu0
  %496 = vdwg.mxu0
  %v498 = vsel %vm453, %v452, 0
  %500 = vmatprep.subr.bf16.mxu0 0
  %501 = vmatpush1.bf16.msra.mxu0 %v425
  %502 = vmatprep.subr.bf16.mxu0 0
  %503 = vmatpush1.bf16.msra.mxu0 %v439
  %504 = vmatprep.subr.bf16.mxu0 0
  %505 = vmatpush1.bf16.msra.mxu0 %v449
  %506 = vmatprep.subr.bf16.mxu0 0
  %507 = vmatpush1.bf16.msra.mxu0 0
  %508 = vmatprep.subr.bf16.mxu0 0
  %509 = vmatpush1.bf16.msra.mxu0 0
  %510 = vmatprep.subr.bf16.mxu0 0
  %511 = vmatpush1.bf16.msra.mxu0 0
  %512 = vmatprep.subr.bf16.mxu0 0
  %513 = vmatpush1.bf16.msra.mxu0 0
  %514 = vmatprep.subr.bf16.mxu0 0
  %515 = vmatpush1.bf16.msra.mxu0 0
  %516 = vmatprep.subr.bf16.mxu0 0
  %517 = vmatpush1.bf16.msra.mxu0 0
  %518 = vmatprep.subr.bf16.mxu0 0
  %519 = vmatpush1.bf16.msra.mxu0 0
  %520 = vmatprep.subr.bf16.mxu0 0
  %521 = vmatpush1.bf16.msra.mxu0 0
  %522 = vmatprep.subr.bf16.mxu0 0
  %523 = vmatpush1.bf16.msra.mxu0 0
  %524 = vmatprep.subr.bf16.mxu0 0
  %525 = vmatpush1.bf16.msra.mxu0 0
  %526 = vmatprep.subr.bf16.mxu0 0
  %527 = vmatpush1.bf16.msra.mxu0 0
  %528 = vmatprep.subr.bf16.mxu0 0
  %529 = vmatpush1.bf16.msra.mxu0 0
  %530 = vmatprep.subr.bf16.mxu0 0
  %531 = vmatpush1.bf16.msra.mxu0 0
  %532 = vmatprep.mubr.bf16.mxu0 0
  %533 = vmatmul.mubr.bf16.gmra.mrb[0].mxu0 %v498
  %v534 = vpop.f32.mrb[0].mxu0
  %v535 = vadd.f32 0.0, %v534
  %v536 = vpop.f32.mrb[0].mxu0
  %v537 = vpop.f32.mrb[0].mxu0
  %v538 = vpop.f32.mrb[0].mxu0
  %539 = vdwg.mxu0
  %v540 = vpack.c.bf16 %v492, %v492
  %v541 = vpack.c.bf16 %v535, %v535
  %542 = vst.msk [vmem:[%s5 + $0x4] sm:$0xf] %vm25, %v540
  %543 = vst.msk [vmem:[%s5 + $0x18] sm:$0xf] %vm25, %v541
  %s544 = scalar_lea.vmem %s2, 12
  %v545 = vld [vmem:[%s544] sm:$0xf]
  %v546 = vld [vmem:[%s544 + $0x4] sm:$0xf]
  %v547 = vld [vmem:[%s544 + $0x8] sm:$0xf]
  %s548 = scalar_lea.vmem %s3, 12
  %v549 = vld [vmem:[%s548] sm:$0xf]
  %v550 = vld [vmem:[%s548 + $0x4] sm:$0xf]
  %v551 = vld [vmem:[%s548 + $0x8] sm:$0xf]
  %s552 = scalar_lea.vmem %s4, 12
  %v553 = vld [vmem:[%s552] sm:$0xf]
  %v554 = vld [vmem:[%s552 + $0x4] sm:$0xf]
  %v555 = vld [vmem:[%s552 + $0x8] sm:$0xf]
  %v558 = vunpack.c.l.b16 %v540
  %v559 = vunpack.c.l.b16 %v541
  %v560 = vpack.c.b16 %v559, %v558
  %v564 = vunpack.c.l.b16 %v545
  %v565 = vunpack.c.l.b16 %v546
  %v566 = vunpack.c.l.b16 %v547
  %v567 = vpack.c.b16 %v565, %v564
  %v568 = vpack.c.b16 %v566, %v566
  %v571 = vsel %vm51, %v560, 0
  %v574 = vsel %vm55, %v568, 0
  %576 = vmatprep.subr.bf16.mxu0 0
  %577 = vmatpush1.bf16.msra.mxu0 %v567
  %578 = vmatprep.subr.bf16.mxu0 0
  %579 = vmatpush1.bf16.msra.mxu0 %v574
  %580 = vmatprep.subr.bf16.mxu0 0
  %581 = vmatpush1.bf16.msra.mxu0 0
  %582 = vmatprep.subr.bf16.mxu0 0
  %583 = vmatpush1.bf16.msra.mxu0 0
  %584 = vmatprep.subr.bf16.mxu0 0
  %585 = vmatpush1.bf16.msra.mxu0 0
  %586 = vmatprep.subr.bf16.mxu0 0
  %587 = vmatpush1.bf16.msra.mxu0 0
  %588 = vmatprep.subr.bf16.mxu0 0
  %589 = vmatpush1.bf16.msra.mxu0 0
  %590 = vmatprep.subr.bf16.mxu0 0
  %591 = vmatpush1.bf16.msra.mxu0 0
  %592 = vmatprep.subr.bf16.mxu0 0
  %593 = vmatpush1.bf16.msra.mxu0 0
  %594 = vmatprep.subr.bf16.mxu0 0
  %595 = vmatpush1.bf16.msra.mxu0 0
  %596 = vmatprep.subr.bf16.mxu0 0
  %597 = vmatpush1.bf16.msra.mxu0 0
  %598 = vmatprep.subr.bf16.mxu0 0
  %599 = vmatpush1.bf16.msra.mxu0 0
  %600 = vmatprep.subr.bf16.mxu0 0
  %601 = vmatpush1.bf16.msra.mxu0 0
  %602 = vmatprep.subr.bf16.mxu0 0
  %603 = vmatpush1.bf16.msra.mxu0 0
  %604 = vmatprep.subr.bf16.mxu0 0
  %605 = vmatpush1.bf16.msra.mxu0 0
  %606 = vmatprep.subr.bf16.mxu0 0
  %607 = vmatpush1.bf16.msra.mxu0 0
  %608 = vmatprep.mubr.bf16.mxu0 0
  %609 = vmatmul.mubr.bf16.gmra.mrb[0].mxu0 %v571
  %v610 = vpop.f32.mrb[0].mxu0
  %v611 = vadd.f32 0.0, %v610
  %v612 = vpop.f32.mrb[0].mxu0
  %v613 = vpop.f32.mrb[0].mxu0
  %v614 = vadd.f32 0.0, %v613
  %v615 = vpop.f32.mrb[0].mxu0
  %616 = vdwg.mxu0
  %v620 = vunpack.c.l.b16 %v549
  %v621 = vunpack.c.l.b16 %v550
  %v622 = vunpack.c.l.b16 %v551
  %v623 = vpack.c.b16 %v621, %v620
  %v624 = vpack.c.b16 %v622, %v622
  %v627 = vsel %vm55, %v624, 0
  %629 = vmatprep.subr.bf16.mxu0 0
  %630 = vmatpush1.bf16.msra.mxu0 %v623
  %631 = vmatprep.subr.bf16.mxu0 0
  %632 = vmatpush1.bf16.msra.mxu0 %v627
  %633 = vmatprep.subr.bf16.mxu0 0
  %634 = vmatpush1.bf16.msra.mxu0 0
  %635 = vmatprep.subr.bf16.mxu0 0
  %636 = vmatpush1.bf16.msra.mxu0 0
  %637 = vmatprep.subr.bf16.mxu0 0
  %638 = vmatpush1.bf16.msra.mxu0 0
  %639 = vmatprep.subr.bf16.mxu0 0
  %640 = vmatpush1.bf16.msra.mxu0 0
  %641 = vmatprep.subr.bf16.mxu0 0
  %642 = vmatpush1.bf16.msra.mxu0 0
  %643 = vmatprep.subr.bf16.mxu0 0
  %644 = vmatpush1.bf16.msra.mxu0 0
  %645 = vmatprep.subr.bf16.mxu0 0
  %646 = vmatpush1.bf16.msra.mxu0 0
  %647 = vmatprep.subr.bf16.mxu0 0
  %648 = vmatpush1.bf16.msra.mxu0 0
  %649 = vmatprep.subr.bf16.mxu0 0
  %650 = vmatpush1.bf16.msra.mxu0 0
  %651 = vmatprep.subr.bf16.mxu0 0
  %652 = vmatpush1.bf16.msra.mxu0 0
  %653 = vmatprep.subr.bf16.mxu0 0
  %654 = vmatpush1.bf16.msra.mxu0 0
  %655 = vmatprep.subr.bf16.mxu0 0
  %656 = vmatpush1.bf16.msra.mxu0 0
  %657 = vmatprep.subr.bf16.mxu0 0
  %658 = vmatpush1.bf16.msra.mxu0 0
  %659 = vmatprep.subr.bf16.mxu0 0
  %660 = vmatpush1.bf16.msra.mxu0 0
  %661 = vmatprep.mubr.bf16.mxu0 0
  %662 = vmatmul.mubr.bf16.gmra.mrb[0].mxu0 %v571
  %v663 = vpop.f32.mrb[0].mxu0
  %v664 = vadd.f32 0.0, %v663
  %v665 = vpop.f32.mrb[0].mxu0
  %v666 = vpop.f32.mrb[0].mxu0
  %v667 = vadd.f32 0.0, %v666
  %v668 = vpop.f32.mrb[0].mxu0
  %669 = vdwg.mxu0
  %v673 = vunpack.c.l.b16 %v553
  %v674 = vunpack.c.l.b16 %v554
  %v675 = vunpack.c.l.b16 %v555
  %v676 = vpack.c.b16 %v674, %v673
  %v677 = vpack.c.b16 %v675, %v675
  %v680 = vsel %vm55, %v677, 0
  %682 = vmatprep.subr.bf16.mxu0 0
  %683 = vmatpush1.bf16.msra.mxu0 %v676
  %684 = vmatprep.subr.bf16.mxu0 0
  %685 = vmatpush1.bf16.msra.mxu0 %v680
  %686 = vmatprep.subr.bf16.mxu0 0
  %687 = vmatpush1.bf16.msra.mxu0 0
  %688 = vmatprep.subr.bf16.mxu0 0
  %689 = vmatpush1.bf16.msra.mxu0 0
  %690 = vmatprep.subr.bf16.mxu0 0
  %691 = vmatpush1.bf16.msra.mxu0 0
  %692 = vmatprep.subr.bf16.mxu0 0
  %693 = vmatpush1.bf16.msra.mxu0 0
  %694 = vmatprep.subr.bf16.mxu0 0
  %695 = vmatpush1.bf16.msra.mxu0 0
  %696 = vmatprep.subr.bf16.mxu0 0
  %697 = vmatpush1.bf16.msra.mxu0 0
  %698 = vmatprep.subr.bf16.mxu0 0
  %699 = vmatpush1.bf16.msra.mxu0 0
  %700 = vmatprep.subr.bf16.mxu0 0
  %701 = vmatpush1.bf16.msra.mxu0 0
  %702 = vmatprep.subr.bf16.mxu0 0
  %703 = vmatpush1.bf16.msra.mxu0 0
  %704 = vmatprep.subr.bf16.mxu0 0
  %705 = vmatpush1.bf16.msra.mxu0 0
  %706 = vmatprep.subr.bf16.mxu0 0
  %707 = vmatpush1.bf16.msra.mxu0 0
  %708 = vmatprep.subr.bf16.mxu0 0
  %709 = vmatpush1.bf16.msra.mxu0 0
  %710 = vmatprep.subr.bf16.mxu0 0
  %711 = vmatpush1.bf16.msra.mxu0 0
  %712 = vmatprep.subr.bf16.mxu0 0
  %713 = vmatpush1.bf16.msra.mxu0 0
  %714 = vmatprep.mubr.bf16.mxu0 0
  %715 = vmatmul.mubr.bf16.gmra.mrb[0].mxu0 %v571
  %v716 = vpop.f32.mrb[0].mxu0
  %v717 = vadd.f32 0.0, %v716
  %v718 = vpop.f32.mrb[0].mxu0
  %v719 = vpop.f32.mrb[0].mxu0
  %v720 = vadd.f32 0.0, %v719
  %v721 = vpop.f32.mrb[0].mxu0
  %722 = vdwg.mxu0
  %v723 = vsel %vm214, %v664, -inf
  %v724 = vrot.slane %v723, 4
  %v725 = vmax.f32 %v723, %v724
  %v726 = vrot.slane %v725, 2
  %v727 = vmax.f32 %v725, %v726
  %v728 = vrot.slane %v727, 1
  %v729 = vmax.f32 %v727, %v728
  %v730 = vsel %vm214, %v667, -inf
  %v731 = vrot.slane %v730, 4
  %v732 = vmax.f32 %v730, %v731
  %v733 = vrot.slane %v732, 2
  %v734 = vmax.f32 %v732, %v733
  %v735 = vrot.slane %v734, 1
  %v736 = vmax.f32 %v734, %v735
  %v737 = vsub.f32 %v664, %v729
  %v738 = vsub.f32 %v667, %v736
  %v739 = vmul.f32 %v737, 1.442695
  %v740 = vpow.pop %v739
  %v741 = vmul.f32 %v738, 1.442695
  %v742 = vpow.pop %v741
  %v743 = vsel %vm214, %v740, 0.0
  %v744 = vrot.slane %v743, 4
  %v745 = vadd.f32 %v743, %v744
  %v746 = vrot.slane %v745, 2
  %v747 = vadd.f32 %v745, %v746
  %v748 = vrot.slane %v747, 1
  %v749 = vadd.f32 %v747, %v748
  %v750 = vsel %vm214, %v742, 0.0
  %v751 = vrot.slane %v750, 4
  %v752 = vadd.f32 %v750, %v751
  %v753 = vrot.slane %v752, 2
  %v754 = vadd.f32 %v752, %v753
  %v755 = vrot.slane %v754, 1
  %v756 = vadd.f32 %v754, %v755
  %v757 = vrcp.pop %v749
  %v758 = vmul.f32 %v740, %v757
  %v759 = vrcp.pop %v756
  %v760 = vmul.f32 %v742, %v759
  %761 = vxpose.xlu0.b32.start [1/16] %v758, 128
  %762 = vxpose.xlu0.b32.cont [2/16] 0.0, 128
  %763 = vxpose.xlu0.b32.cont [3/16] 0.0, 128
  %764 = vxpose.xlu0.b32.cont [4/16] 0.0, 128
  %765 = vxpose.xlu0.b32.cont [5/16] 0.0, 128
  %766 = vxpose.xlu0.b32.cont [6/16] 0.0, 128
  %767 = vxpose.xlu0.b32.cont [7/16] 0.0, 128
  %768 = vxpose.xlu0.b32.cont [8/16] 0.0, 128
  %769 = vxpose.xlu0.b32.cont [9/16] 0.0, 128
  %770 = vxpose.xlu0.b32.cont [10/16] 0.0, 128
  %771 = vxpose.xlu0.b32.cont [11/16] 0.0, 128
  %772 = vxpose.xlu0.b32.cont [12/16] 0.0, 128
  %773 = vxpose.xlu0.b32.cont [13/16] 0.0, 128
  %774 = vxpose.xlu0.b32.cont [14/16] 0.0, 128
  %775 = vxpose.xlu0.b32.cont [15/16] 0.0, 128
  %776 = vxpose.xlu0.b32.end [16/16] 0.0, 128
  %v777 = vpop.trf.xlu0
  %v778 = vpop.trf.xlu0
  %v779 = vpop.trf.xlu0
  %v780 = vpop.trf.xlu0
  %v781 = vpop.trf.xlu0
  %v782 = vpop.trf.xlu0
  %v783 = vpop.trf.xlu0
  %v784 = vpop.trf.xlu0
  %v785 = vpop.trf.xlu0
  %v786 = vpop.trf.xlu0
  %v787 = vpop.trf.xlu0
  %v788 = vpop.trf.xlu0
  %v789 = vpop.trf.xlu0
  %v790 = vpop.trf.xlu0
  %v791 = vpop.trf.xlu0
  %v792 = vpop.trf.xlu0
  %793 = vxpose.xlu0.b32.start [1/16] %v760, 128
  %794 = vxpose.xlu0.b32.cont [2/16] 0.0, 128
  %795 = vxpose.xlu0.b32.cont [3/16] 0.0, 128
  %796 = vxpose.xlu0.b32.cont [4/16] 0.0, 128
  %797 = vxpose.xlu0.b32.cont [5/16] 0.0, 128
  %798 = vxpose.xlu0.b32.cont [6/16] 0.0, 128
  %799 = vxpose.xlu0.b32.cont [7/16] 0.0, 128
  %800 = vxpose.xlu0.b32.cont [8/16] 0.0, 128
  %801 = vxpose.xlu0.b32.cont [9/16] 0.0, 128
  %802 = vxpose.xlu0.b32.cont [10/16] 0.0, 128
  %803 = vxpose.xlu0.b32.cont [11/16] 0.0, 128
  %804 = vxpose.xlu0.b32.cont [12/16] 0.0, 128
  %805 = vxpose.xlu0.b32.cont [13/16] 0.0, 128
  %806 = vxpose.xlu0.b32.cont [14/16] 0.0, 128
  %807 = vxpose.xlu0.b32.cont [15/16] 0.0, 128
  %808 = vxpose.xlu0.b32.end [16/16] 0.0, 128
  %v809 = vpop.trf.xlu0
  %v810 = vpop.trf.xlu0
  %v811 = vpop.trf.xlu0
  %v812 = vpop.trf.xlu0
  %v813 = vpop.trf.xlu0
  %v814 = vpop.trf.xlu0
  %v815 = vpop.trf.xlu0
  %v816 = vpop.trf.xlu0
  %v817 = vpop.trf.xlu0
  %v818 = vpop.trf.xlu0
  %v819 = vpop.trf.xlu0
  %v820 = vpop.trf.xlu0
  %v821 = vpop.trf.xlu0
  %v822 = vpop.trf.xlu0
  %v823 = vpop.trf.xlu0
  %v824 = vpop.trf.xlu0
  %v825 = vpack.c.bf16 %v778, %v777
  %v826 = vpack.c.bf16 %v810, %v809
  %v827 = vpack.c.bf16 %v717, %v717
  %v828 = vpack.c.bf16 %v720, %v720
  %v830 = vsel %vm321, %v825, 0
  %v833 = vsel %vm55, %v827, 0
  %835 = vmatprep.subr.bf16.mxu0 0
  %836 = vmatpush1.bf16.msra.mxu0 %v833
  %837 = vmatprep.subr.bf16.mxu0 0
  %838 = vmatpush1.bf16.msra.mxu0 0
  %839 = vmatprep.subr.bf16.mxu0 0
  %840 = vmatpush1.bf16.msra.mxu0 0
  %841 = vmatprep.subr.bf16.mxu0 0
  %842 = vmatpush1.bf16.msra.mxu0 0
  %843 = vmatprep.subr.bf16.mxu0 0
  %844 = vmatpush1.bf16.msra.mxu0 0
  %845 = vmatprep.subr.bf16.mxu0 0
  %846 = vmatpush1.bf16.msra.mxu0 0
  %847 = vmatprep.subr.bf16.mxu0 0
  %848 = vmatpush1.bf16.msra.mxu0 0
  %849 = vmatprep.subr.bf16.mxu0 0
  %850 = vmatpush1.bf16.msra.mxu0 0
  %851 = vmatprep.subr.bf16.mxu0 0
  %852 = vmatpush1.bf16.msra.mxu0 0
  %853 = vmatprep.subr.bf16.mxu0 0
  %854 = vmatpush1.bf16.msra.mxu0 0
  %855 = vmatprep.subr.bf16.mxu0 0
  %856 = vmatpush1.bf16.msra.mxu0 0
  %857 = vmatprep.subr.bf16.mxu0 0
  %858 = vmatpush1.bf16.msra.mxu0 0
  %859 = vmatprep.subr.bf16.mxu0 0
  %860 = vmatpush1.bf16.msra.mxu0 0
  %861 = vmatprep.subr.bf16.mxu0 0
  %862 = vmatpush1.bf16.msra.mxu0 0
  %863 = vmatprep.subr.bf16.mxu0 0
  %864 = vmatpush1.bf16.msra.mxu0 0
  %865 = vmatprep.subr.bf16.mxu0 0
  %866 = vmatpush1.bf16.msra.mxu0 0
  %867 = vmatprep.mubr.bf16.mxu0 0
  %868 = vmatmul.mubr.bf16.gmra.mrb[0].mxu0 %v830
  %v869 = vpop.f32.mrb[0].mxu0
  %v870 = vadd.f32 0.0, %v869
  %v871 = vpop.f32.mrb[0].mxu0
  %v872 = vpop.f32.mrb[0].mxu0
  %v873 = vadd.f32 0.0, %v872
  %v874 = vpop.f32.mrb[0].mxu0
  %875 = vdwg.mxu0
  %v877 = vsel %vm321, %v826, 0
  %v880 = vsel %vm55, %v828, 0
  %882 = vmatprep.subr.bf16.mxu0 0
  %883 = vmatpush1.bf16.msra.mxu0 %v880
  %884 = vmatprep.subr.bf16.mxu0 0
  %885 = vmatpush1.bf16.msra.mxu0 0
  %886 = vmatprep.subr.bf16.mxu0 0
  %887 = vmatpush1.bf16.msra.mxu0 0
  %888 = vmatprep.subr.bf16.mxu0 0
  %889 = vmatpush1.bf16.msra.mxu0 0
  %890 = vmatprep.subr.bf16.mxu0 0
  %891 = vmatpush1.bf16.msra.mxu0 0
  %892 = vmatprep.subr.bf16.mxu0 0
  %893 = vmatpush1.bf16.msra.mxu0 0
  %894 = vmatprep.subr.bf16.mxu0 0
  %895 = vmatpush1.bf16.msra.mxu0 0
  %896 = vmatprep.subr.bf16.mxu0 0
  %897 = vmatpush1.bf16.msra.mxu0 0
  %898 = vmatprep.subr.bf16.mxu0 0
  %899 = vmatpush1.bf16.msra.mxu0 0
  %900 = vmatprep.subr.bf16.mxu0 0
  %901 = vmatpush1.bf16.msra.mxu0 0
  %902 = vmatprep.subr.bf16.mxu0 0
  %903 = vmatpush1.bf16.msra.mxu0 0
  %904 = vmatprep.subr.bf16.mxu0 0
  %905 = vmatpush1.bf16.msra.mxu0 0
  %906 = vmatprep.subr.bf16.mxu0 0
  %907 = vmatpush1.bf16.msra.mxu0 0
  %908 = vmatprep.subr.bf16.mxu0 0
  %909 = vmatpush1.bf16.msra.mxu0 0
  %910 = vmatprep.subr.bf16.mxu0 0
  %911 = vmatpush1.bf16.msra.mxu0 0
  %912 = vmatprep.subr.bf16.mxu0 0
  %913 = vmatpush1.bf16.msra.mxu0 0
  %914 = vmatprep.mubr.bf16.mxu0 0
  %915 = vmatmul.mubr.bf16.gmra.mrb[0].mxu0 %v877
  %v916 = vpop.f32.mrb[0].mxu0
  %v917 = vadd.f32 0.0, %v916
  %v918 = vpop.f32.mrb[0].mxu0
  %v919 = vpop.f32.mrb[0].mxu0
  %v920 = vadd.f32 0.0, %v919
  %v921 = vpop.f32.mrb[0].mxu0
  %922 = vdwg.mxu0
  %v923 = vpack.c.bf16 %v873, %v870
  %v924 = vpack.c.bf16 %v920, %v917
  %v926 = vsel %vm321, %v923, 0
  %v928 = vsel %vm321, %v924, 0
  %v929 = vsel %vm214, %v926, 0
  %v931 = vsel %vm214, %v928, 0
  %935 = vrot.lane.b32.xlu0 %v923, 8
  %v936 = vpop.permute.xlu0 %935
  %937 = vrot.lane.b32.xlu0 %v924, 8
  %v938 = vpop.permute.xlu0 %937
  %v940 = vsel %vm321, 0, %v936
  %v942 = vsel %vm321, 0, %v938
  %v943 = vsel %vm214, %v940, 0
  %v945 = vsel %vm214, %v942, 0
  %947 = vrot.lane.b32.xlu0 %v923, 16
  %v948 = vpop.permute.xlu0 %947
  %949 = vrot.lane.b32.xlu0 %v924, 16
  %v950 = vpop.permute.xlu0 %949
  %v952 = vsel %vm214, 0, %v948
  %v955 = vsel %vm214, 0, %v950
  %v957 = vpack.c.bf16 %v611, %v611
  %v958 = vpack.c.bf16 %v614, %v614
  %v960 = vsel %vm453, %v957, 0
  %962 = vmatprep.subr.bf16.mxu0 0
  %963 = vmatpush1.bf16.msra.mxu0 %v929
  %964 = vmatprep.subr.bf16.mxu0 0
  %965 = vmatpush1.bf16.msra.mxu0 %v943
  %966 = vmatprep.subr.bf16.mxu0 0
  %967 = vmatpush1.bf16.msra.mxu0 %v952
  %968 = vmatprep.subr.bf16.mxu0 0
  %969 = vmatpush1.bf16.msra.mxu0 0
  %970 = vmatprep.subr.bf16.mxu0 0
  %971 = vmatpush1.bf16.msra.mxu0 0
  %972 = vmatprep.subr.bf16.mxu0 0
  %973 = vmatpush1.bf16.msra.mxu0 0
  %974 = vmatprep.subr.bf16.mxu0 0
  %975 = vmatpush1.bf16.msra.mxu0 0
  %976 = vmatprep.subr.bf16.mxu0 0
  %977 = vmatpush1.bf16.msra.mxu0 0
  %978 = vmatprep.subr.bf16.mxu0 0
  %979 = vmatpush1.bf16.msra.mxu0 0
  %980 = vmatprep.subr.bf16.mxu0 0
  %981 = vmatpush1.bf16.msra.mxu0 0
  %982 = vmatprep.subr.bf16.mxu0 0
  %983 = vmatpush1.bf16.msra.mxu0 0
  %984 = vmatprep.subr.bf16.mxu0 0
  %985 = vmatpush1.bf16.msra.mxu0 0
  %986 = vmatprep.subr.bf16.mxu0 0
  %987 = vmatpush1.bf16.msra.mxu0 0
  %988 = vmatprep.subr.bf16.mxu0 0
  %989 = vmatpush1.bf16.msra.mxu0 0
  %990 = vmatprep.subr.bf16.mxu0 0
  %991 = vmatpush1.bf16.msra.mxu0 0
  %992 = vmatprep.subr.bf16.mxu0 0
  %993 = vmatpush1.bf16.msra.mxu0 0
  %994 = vmatprep.mubr.bf16.mxu0 0
  %995 = vmatmul.mubr.bf16.gmra.mrb[0].mxu0 %v960
  %v996 = vpop.f32.mrb[0].mxu0
  %v997 = vadd.f32 0.0, %v996
  %v998 = vpop.f32.mrb[0].mxu0
  %v999 = vpop.f32.mrb[0].mxu0
  %v1000 = vpop.f32.mrb[0].mxu0
  %1001 = vdwg.mxu0
  %v1003 = vsel %vm453, %v958, 0
  %1005 = vmatprep.subr.bf16.mxu0 0
  %1006 = vmatpush1.bf16.msra.mxu0 %v931
  %1007 = vmatprep.subr.bf16.mxu0 0
  %1008 = vmatpush1.bf16.msra.mxu0 %v945
  %1009 = vmatprep.subr.bf16.mxu0 0
  %1010 = vmatpush1.bf16.msra.mxu0 %v955
  %1011 = vmatprep.subr.bf16.mxu0 0
  %1012 = vmatpush1.bf16.msra.mxu0 0
  %1013 = vmatprep.subr.bf16.mxu0 0
  %1014 = vmatpush1.bf16.msra.mxu0 0
  %1015 = vmatprep.subr.bf16.mxu0 0
  %1016 = vmatpush1.bf16.msra.mxu0 0
  %1017 = vmatprep.subr.bf16.mxu0 0
  %1018 = vmatpush1.bf16.msra.mxu0 0
  %1019 = vmatprep.subr.bf16.mxu0 0
  %1020 = vmatpush1.bf16.msra.mxu0 0
  %1021 = vmatprep.subr.bf16.mxu0 0
  %1022 = vmatpush1.bf16.msra.mxu0 0
  %1023 = vmatprep.subr.bf16.mxu0 0
  %1024 = vmatpush1.bf16.msra.mxu0 0
  %1025 = vmatprep.subr.bf16.mxu0 0
  %1026 = vmatpush1.bf16.msra.mxu0 0
  %1027 = vmatprep.subr.bf16.mxu0 0
  %1028 = vmatpush1.bf16.msra.mxu0 0
  %1029 = vmatprep.subr.bf16.mxu0 0
  %1030 = vmatpush1.bf16.msra.mxu0 0
  %1031 = vmatprep.subr.bf16.mxu0 0
  %1032 = vmatpush1.bf16.msra.mxu0 0
  %1033 = vmatprep.subr.bf16.mxu0 0
  %1034 = vmatpush1.bf16.msra.mxu0 0
  %1035 = vmatprep.subr.bf16.mxu0 0
  %1036 = vmatpush1.bf16.msra.mxu0 0
  %1037 = vmatprep.mubr.bf16.mxu0 0
  %1038 = vmatmul.mubr.bf16.gmra.mrb[0].mxu0 %v1003
  %v1039 = vpop.f32.mrb[0].mxu0
  %v1040 = vadd.f32 0.0, %v1039
  %v1041 = vpop.f32.mrb[0].mxu0
  %v1042 = vpop.f32.mrb[0].mxu0
  %v1043 = vpop.f32.mrb[0].mxu0
  %1044 = vdwg.mxu0
  %v1045 = vpack.c.bf16 %v997, %v997
  %v1046 = vpack.c.bf16 %v1040, %v1040
  %1047 = vst.msk [vmem:[%s5 + $0x8] sm:$0xf] %vm25, %v1045
  %1048 = vst.msk [vmem:[%s5 + $0x1c] sm:$0xf] %vm25, %v1046
  %s1049 = scalar_lea.vmem %s2, 24
  %v1050 = vld [vmem:[%s1049] sm:$0xf]
  %v1051 = vld [vmem:[%s1049 + $0x4] sm:$0xf]
  %v1052 = vld [vmem:[%s1049 + $0x8] sm:$0xf]
  %s1053 = scalar_lea.vmem %s3, 24
  %v1054 = vld [vmem:[%s1053] sm:$0xf]
  %v1055 = vld [vmem:[%s1053 + $0x4] sm:$0xf]
  %v1056 = vld [vmem:[%s1053 + $0x8] sm:$0xf]
  %s1057 = scalar_lea.vmem %s4, 24
  %v1058 = vld [vmem:[%s1057] sm:$0xf]
  %v1059 = vld [vmem:[%s1057 + $0x4] sm:$0xf]
  %v1060 = vld [vmem:[%s1057 + $0x8] sm:$0xf]
  %v1064 = vunpack.c.l.b16 %v1050
  %v1065 = vunpack.c.l.b16 %v1051
  %v1066 = vunpack.c.l.b16 %v1052
  %v1067 = vpack.c.b16 %v1065, %v1064
  %v1068 = vpack.c.b16 %v1066, %v1066
  %v1071 = vsel %vm55, %v1068, 0
  %1073 = vmatprep.subr.bf16.mxu0 0
  %1074 = vmatpush1.bf16.msra.mxu0 %v1067
  %1075 = vmatprep.subr.bf16.mxu0 0
  %1076 = vmatpush1.bf16.msra.mxu0 %v1071
  %1077 = vmatprep.subr.bf16.mxu0 0
  %1078 = vmatpush1.bf16.msra.mxu0 0
  %1079 = vmatprep.subr.bf16.mxu0 0
  %1080 = vmatpush1.bf16.msra.mxu0 0
  %1081 = vmatprep.subr.bf16.mxu0 0
  %1082 = vmatpush1.bf16.msra.mxu0 0
  %1083 = vmatprep.subr.bf16.mxu0 0
  %1084 = vmatpush1.bf16.msra.mxu0 0
  %1085 = vmatprep.subr.bf16.mxu0 0
  %1086 = vmatpush1.bf16.msra.mxu0 0
  %1087 = vmatprep.subr.bf16.mxu0 0
  %1088 = vmatpush1.bf16.msra.mxu0 0
  %1089 = vmatprep.subr.bf16.mxu0 0
  %1090 = vmatpush1.bf16.msra.mxu0 0
  %1091 = vmatprep.subr.bf16.mxu0 0
  %1092 = vmatpush1.bf16.msra.mxu0 0
  %1093 = vmatprep.subr.bf16.mxu0 0
  %1094 = vmatpush1.bf16.msra.mxu0 0
  %1095 = vmatprep.subr.bf16.mxu0 0
  %1096 = vmatpush1.bf16.msra.mxu0 0
  %1097 = vmatprep.subr.bf16.mxu0 0
  %1098 = vmatpush1.bf16.msra.mxu0 0
  %1099 = vmatprep.subr.bf16.mxu0 0
  %1100 = vmatpush1.bf16.msra.mxu0 0
  %1101 = vmatprep.subr.bf16.mxu0 0
  %1102 = vmatpush1.bf16.msra.mxu0 0
  %1103 = vmatprep.subr.bf16.mxu0 0
  %1104 = vmatpush1.bf16.msra.mxu0 0
  %1105 = vmatprep.mubr.bf16.mxu0 0
  %1106 = vmatmul.mubr.bf16.gmra.mrb[0].mxu0 %v571
  %v1107 = vpop.f32.mrb[0].mxu0
  %v1108 = vadd.f32 0.0, %v1107
  %v1109 = vpop.f32.mrb[0].mxu0
  %v1110 = vpop.f32.mrb[0].mxu0
  %v1111 = vadd.f32 0.0, %v1110
  %v1112 = vpop.f32.mrb[0].mxu0
  %1113 = vdwg.mxu0
  %v1116 = vunpack.c.l.b16 %v1045
  %v1117 = vunpack.c.l.b16 %v1046
  %v1118 = vpack.c.b16 %v1117, %v1116
  %v1122 = vunpack.c.l.b16 %v1054
  %v1123 = vunpack.c.l.b16 %v1055
  %v1124 = vunpack.c.l.b16 %v1056
  %v1125 = vpack.c.b16 %v1123, %v1122
  %v1126 = vpack.c.b16 %v1124, %v1124
  %v1129 = vsel %vm51, %v1118, 0
  %v1132 = vsel %vm55, %v1126, 0
  %1134 = vmatprep.subr.bf16.mxu0 0
  %1135 = vmatpush1.bf16.msra.mxu0 %v1125
  %1136 = vmatprep.subr.bf16.mxu0 0
  %1137 = vmatpush1.bf16.msra.mxu0 %v1132
  %1138 = vmatprep.subr.bf16.mxu0 0
  %1139 = vmatpush1.bf16.msra.mxu0 0
  %1140 = vmatprep.subr.bf16.mxu0 0
  %1141 = vmatpush1.bf16.msra.mxu0 0
  %1142 = vmatprep.subr.bf16.mxu0 0
  %1143 = vmatpush1.bf16.msra.mxu0 0
  %1144 = vmatprep.subr.bf16.mxu0 0
  %1145 = vmatpush1.bf16.msra.mxu0 0
  %1146 = vmatprep.subr.bf16.mxu0 0
  %1147 = vmatpush1.bf16.msra.mxu0 0
  %1148 = vmatprep.subr.bf16.mxu0 0
  %1149 = vmatpush1.bf16.msra.mxu0 0
  %1150 = vmatprep.subr.bf16.mxu0 0
  %1151 = vmatpush1.bf16.msra.mxu0 0
  %1152 = vmatprep.subr.bf16.mxu0 0
  %1153 = vmatpush1.bf16.msra.mxu0 0
  %1154 = vmatprep.subr.bf16.mxu0 0
  %1155 = vmatpush1.bf16.msra.mxu0 0
  %1156 = vmatprep.subr.bf16.mxu0 0
  %1157 = vmatpush1.bf16.msra.mxu0 0
  %1158 = vmatprep.subr.bf16.mxu0 0
  %1159 = vmatpush1.bf16.msra.mxu0 0
  %1160 = vmatprep.subr.bf16.mxu0 0
  %1161 = vmatpush1.bf16.msra.mxu0 0
  %1162 = vmatprep.subr.bf16.mxu0 0
  %1163 = vmatpush1.bf16.msra.mxu0 0
  %1164 = vmatprep.subr.bf16.mxu0 0
  %1165 = vmatpush1.bf16.msra.mxu0 0
  %1166 = vmatprep.mubr.bf16.mxu0 0
  %1167 = vmatmul.mubr.bf16.gmra.mrb[0].mxu0 %v1129
  %v1168 = vpop.f32.mrb[0].mxu0
  %v1169 = vadd.f32 0.0, %v1168
  %v1170 = vpop.f32.mrb[0].mxu0
  %v1171 = vpop.f32.mrb[0].mxu0
  %v1172 = vadd.f32 0.0, %v1171
  %v1173 = vpop.f32.mrb[0].mxu0
  %1174 = vdwg.mxu0
  %v1178 = vunpack.c.l.b16 %v1058
  %v1179 = vunpack.c.l.b16 %v1059
  %v1180 = vunpack.c.l.b16 %v1060
  %v1181 = vpack.c.b16 %v1179, %v1178
  %v1182 = vpack.c.b16 %v1180, %v1180
  %v1185 = vsel %vm55, %v1182, 0
  %1187 = vmatprep.subr.bf16.mxu0 0
  %1188 = vmatpush1.bf16.msra.mxu0 %v1181
  %1189 = vmatprep.subr.bf16.mxu0 0
  %1190 = vmatpush1.bf16.msra.mxu0 %v1185
  %1191 = vmatprep.subr.bf16.mxu0 0
  %1192 = vmatpush1.bf16.msra.mxu0 0
  %1193 = vmatprep.subr.bf16.mxu0 0
  %1194 = vmatpush1.bf16.msra.mxu0 0
  %1195 = vmatprep.subr.bf16.mxu0 0
  %1196 = vmatpush1.bf16.msra.mxu0 0
  %1197 = vmatprep.subr.bf16.mxu0 0
  %1198 = vmatpush1.bf16.msra.mxu0 0
  %1199 = vmatprep.subr.bf16.mxu0 0
  %1200 = vmatpush1.bf16.msra.mxu0 0
  %1201 = vmatprep.subr.bf16.mxu0 0
  %1202 = vmatpush1.bf16.msra.mxu0 0
  %1203 = vmatprep.subr.bf16.mxu0 0
  %1204 = vmatpush1.bf16.msra.mxu0 0
  %1205 = vmatprep.subr.bf16.mxu0 0
  %1206 = vmatpush1.bf16.msra.mxu0 0
  %1207 = vmatprep.subr.bf16.mxu0 0
  %1208 = vmatpush1.bf16.msra.mxu0 0
  %1209 = vmatprep.subr.bf16.mxu0 0
  %1210 = vmatpush1.bf16.msra.mxu0 0
  %1211 = vmatprep.subr.bf16.mxu0 0
  %1212 = vmatpush1.bf16.msra.mxu0 0
  %1213 = vmatprep.subr.bf16.mxu0 0
  %1214 = vmatpush1.bf16.msra.mxu0 0
  %1215 = vmatprep.subr.bf16.mxu0 0
  %1216 = vmatpush1.bf16.msra.mxu0 0
  %1217 = vmatprep.subr.bf16.mxu0 0
  %1218 = vmatpush1.bf16.msra.mxu0 0
  %1219 = vmatprep.mubr.bf16.mxu0 0
  %1220 = vmatmul.mubr.bf16.gmra.mrb[0].mxu0 %v1129
  %v1221 = vpop.f32.mrb[0].mxu0
  %v1222 = vadd.f32 0.0, %v1221
  %v1223 = vpop.f32.mrb[0].mxu0
  %v1224 = vpop.f32.mrb[0].mxu0
  %v1225 = vadd.f32 0.0, %v1224
  %v1226 = vpop.f32.mrb[0].mxu0
  %1227 = vdwg.mxu0
  %v1228 = vsel %vm214, %v1169, -inf
  %v1229 = vrot.slane %v1228, 4
  %v1230 = vmax.f32 %v1228, %v1229
  %v1231 = vrot.slane %v1230, 2
  %v1232 = vmax.f32 %v1230, %v1231
  %v1233 = vrot.slane %v1232, 1
  %v1234 = vmax.f32 %v1232, %v1233
  %v1235 = vsel %vm214, %v1172, -inf
  %v1236 = vrot.slane %v1235, 4
  %v1237 = vmax.f32 %v1235, %v1236
  %v1238 = vrot.slane %v1237, 2
  %v1239 = vmax.f32 %v1237, %v1238
  %v1240 = vrot.slane %v1239, 1
  %v1241 = vmax.f32 %v1239, %v1240
  %v1242 = vsub.f32 %v1169, %v1234
  %v1243 = vsub.f32 %v1172, %v1241
  %v1244 = vmul.f32 %v1242, 1.442695
  %v1245 = vpow.pop %v1244
  %v1246 = vmul.f32 %v1243, 1.442695
  %v1247 = vpow.pop %v1246
  %v1248 = vsel %vm214, %v1245, 0.0
  %v1249 = vrot.slane %v1248, 4
  %v1250 = vadd.f32 %v1248, %v1249
  %v1251 = vrot.slane %v1250, 2
  %v1252 = vadd.f32 %v1250, %v1251
  %v1253 = vrot.slane %v1252, 1
  %v1254 = vadd.f32 %v1252, %v1253
  %v1255 = vsel %vm214, %v1247, 0.0
  %v1256 = vrot.slane %v1255, 4
  %v1257 = vadd.f32 %v1255, %v1256
  %v1258 = vrot.slane %v1257, 2
  %v1259 = vadd.f32 %v1257, %v1258
  %v1260 = vrot.slane %v1259, 1
  %v1261 = vadd.f32 %v1259, %v1260
  %v1262 = vrcp.pop %v1254
  %v1263 = vmul.f32 %v1245, %v1262
  %v1264 = vrcp.pop %v1261
  %v1265 = vmul.f32 %v1247, %v1264
  %1266 = vxpose.xlu0.b32.start [1/16] %v1263, 128
  %1267 = vxpose.xlu0.b32.cont [2/16] 0.0, 128
  %1268 = vxpose.xlu0.b32.cont [3/16] 0.0, 128
  %1269 = vxpose.xlu0.b32.cont [4/16] 0.0, 128
  %1270 = vxpose.xlu0.b32.cont [5/16] 0.0, 128
  %1271 = vxpose.xlu0.b32.cont [6/16] 0.0, 128
  %1272 = vxpose.xlu0.b32.cont [7/16] 0.0, 128
  %1273 = vxpose.xlu0.b32.cont [8/16] 0.0, 128
  %1274 = vxpose.xlu0.b32.cont [9/16] 0.0, 128
  %1275 = vxpose.xlu0.b32.cont [10/16] 0.0, 128
  %1276 = vxpose.xlu0.b32.cont [11/16] 0.0, 128
  %1277 = vxpose.xlu0.b32.cont [12/16] 0.0, 128
  %1278 = vxpose.xlu0.b32.cont [13/16] 0.0, 128
  %1279 = vxpose.xlu0.b32.cont [14/16] 0.0, 128
  %1280 = vxpose.xlu0.b32.cont [15/16] 0.0, 128
  %1281 = vxpose.xlu0.b32.end [16/16] 0.0, 128
  %v1282 = vpop.trf.xlu0
  %v1283 = vpop.trf.xlu0
  %v1284 = vpop.trf.xlu0
  %v1285 = vpop.trf.xlu0
  %v1286 = vpop.trf.xlu0
  %v1287 = vpop.trf.xlu0
  %v1288 = vpop.trf.xlu0
  %v1289 = vpop.trf.xlu0
  %v1290 = vpop.trf.xlu0
  %v1291 = vpop.trf.xlu0
  %v1292 = vpop.trf.xlu0
  %v1293 = vpop.trf.xlu0
  %v1294 = vpop.trf.xlu0
  %v1295 = vpop.trf.xlu0
  %v1296 = vpop.trf.xlu0
  %v1297 = vpop.trf.xlu0
  %1298 = vxpose.xlu0.b32.start [1/16] %v1265, 128
  %1299 = vxpose.xlu0.b32.cont [2/16] 0.0, 128
  %1300 = vxpose.xlu0.b32.cont [3/16] 0.0, 128
  %1301 = vxpose.xlu0.b32.cont [4/16] 0.0, 128
  %1302 = vxpose.xlu0.b32.cont [5/16] 0.0, 128
  %1303 = vxpose.xlu0.b32.cont [6/16] 0.0, 128
  %1304 = vxpose.xlu0.b32.cont [7/16] 0.0, 128
  %1305 = vxpose.xlu0.b32.cont [8/16] 0.0, 128
  %1306 = vxpose.xlu0.b32.cont [9/16] 0.0, 128
  %1307 = vxpose.xlu0.b32.cont [10/16] 0.0, 128
  %1308 = vxpose.xlu0.b32.cont [11/16] 0.0, 128
  %1309 = vxpose.xlu0.b32.cont [12/16] 0.0, 128
  %1310 = vxpose.xlu0.b32.cont [13/16] 0.0, 128
  %1311 = vxpose.xlu0.b32.cont [14/16] 0.0, 128
  %1312 = vxpose.xlu0.b32.cont [15/16] 0.0, 128
  %1313 = vxpose.xlu0.b32.end [16/16] 0.0, 128
  %v1314 = vpop.trf.xlu0
  %v1315 = vpop.trf.xlu0
  %v1316 = vpop.trf.xlu0
  %v1317 = vpop.trf.xlu0
  %v1318 = vpop.trf.xlu0
  %v1319 = vpop.trf.xlu0
  %v1320 = vpop.trf.xlu0
  %v1321 = vpop.trf.xlu0
  %v1322 = vpop.trf.xlu0
  %v1323 = vpop.trf.xlu0
  %v1324 = vpop.trf.xlu0
  %v1325 = vpop.trf.xlu0
  %v1326 = vpop.trf.xlu0
  %v1327 = vpop.trf.xlu0
  %v1328 = vpop.trf.xlu0
  %v1329 = vpop.trf.xlu0
  %v1330 = vpack.c.bf16 %v1283, %v1282
  %v1331 = vpack.c.bf16 %v1315, %v1314
  %v1332 = vpack.c.bf16 %v1222, %v1222
  %v1333 = vpack.c.bf16 %v1225, %v1225
  %v1335 = vsel %vm321, %v1330, 0
  %v1338 = vsel %vm55, %v1332, 0
  %1340 = vmatprep.subr.bf16.mxu0 0
  %1341 = vmatpush1.bf16.msra.mxu0 %v1338
  %1342 = vmatprep.subr.bf16.mxu0 0
  %1343 = vmatpush1.bf16.msra.mxu0 0
  %1344 = vmatprep.subr.bf16.mxu0 0
  %1345 = vmatpush1.bf16.msra.mxu0 0
  %1346 = vmatprep.subr.bf16.mxu0 0
  %1347 = vmatpush1.bf16.msra.mxu0 0
  %1348 = vmatprep.subr.bf16.mxu0 0
  %1349 = vmatpush1.bf16.msra.mxu0 0
  %1350 = vmatprep.subr.bf16.mxu0 0
  %1351 = vmatpush1.bf16.msra.mxu0 0
  %1352 = vmatprep.subr.bf16.mxu0 0
  %1353 = vmatpush1.bf16.msra.mxu0 0
  %1354 = vmatprep.subr.bf16.mxu0 0
  %1355 = vmatpush1.bf16.msra.mxu0 0
  %1356 = vmatprep.subr.bf16.mxu0 0
  %1357 = vmatpush1.bf16.msra.mxu0 0
  %1358 = vmatprep.subr.bf16.mxu0 0
  %1359 = vmatpush1.bf16.msra.mxu0 0
  %1360 = vmatprep.subr.bf16.mxu0 0
  %1361 = vmatpush1.bf16.msra.mxu0 0
  %1362 = vmatprep.subr.bf16.mxu0 0
  %1363 = vmatpush1.bf16.msra.mxu0 0
  %1364 = vmatprep.subr.bf16.mxu0 0
  %1365 = vmatpush1.bf16.msra.mxu0 0
  %1366 = vmatprep.subr.bf16.mxu0 0
  %1367 = vmatpush1.bf16.msra.mxu0 0
  %1368 = vmatprep.subr.bf16.mxu0 0
  %1369 = vmatpush1.bf16.msra.mxu0 0
  %1370 = vmatprep.subr.bf16.mxu0 0
  %1371 = vmatpush1.bf16.msra.mxu0 0
  %1372 = vmatprep.mubr.bf16.mxu0 0
  %1373 = vmatmul.mubr.bf16.gmra.mrb[0].mxu0 %v1335
  %v1374 = vpop.f32.mrb[0].mxu0
  %v1375 = vadd.f32 0.0, %v1374
  %v1376 = vpop.f32.mrb[0].mxu0
  %v1377 = vpop.f32.mrb[0].mxu0
  %v1378 = vadd.f32 0.0, %v1377
  %v1379 = vpop.f32.mrb[0].mxu0
  %1380 = vdwg.mxu0
  %v1382 = vsel %vm321, %v1331, 0
  %v1385 = vsel %vm55, %v1333, 0
  %1387 = vmatprep.subr.bf16.mxu0 0
  %1388 = vmatpush1.bf16.msra.mxu0 %v1385
  %1389 = vmatprep.subr.bf16.mxu0 0
  %1390 = vmatpush1.bf16.msra.mxu0 0
  %1391 = vmatprep.subr.bf16.mxu0 0
  %1392 = vmatpush1.bf16.msra.mxu0 0
  %1393 = vmatprep.subr.bf16.mxu0 0
  %1394 = vmatpush1.bf16.msra.mxu0 0
  %1395 = vmatprep.subr.bf16.mxu0 0
  %1396 = vmatpush1.bf16.msra.mxu0 0
  %1397 = vmatprep.subr.bf16.mxu0 0
  %1398 = vmatpush1.bf16.msra.mxu0 0
  %1399 = vmatprep.subr.bf16.mxu0 0
  %1400 = vmatpush1.bf16.msra.mxu0 0
  %1401 = vmatprep.subr.bf16.mxu0 0
  %1402 = vmatpush1.bf16.msra.mxu0 0
  %1403 = vmatprep.subr.bf16.mxu0 0
  %1404 = vmatpush1.bf16.msra.mxu0 0
  %1405 = vmatprep.subr.bf16.mxu0 0
  %1406 = vmatpush1.bf16.msra.mxu0 0
  %1407 = vmatprep.subr.bf16.mxu0 0
  %1408 = vmatpush1.bf16.msra.mxu0 0
  %1409 = vmatprep.subr.bf16.mxu0 0
  %1410 = vmatpush1.bf16.msra.mxu0 0
  %1411 = vmatprep.subr.bf16.mxu0 0
  %1412 = vmatpush1.bf16.msra.mxu0 0
  %1413 = vmatprep.subr.bf16.mxu0 0
  %1414 = vmatpush1.bf16.msra.mxu0 0
  %1415 = vmatprep.subr.bf16.mxu0 0
  %1416 = vmatpush1.bf16.msra.mxu0 0
  %1417 = vmatprep.subr.bf16.mxu0 0
  %1418 = vmatpush1.bf16.msra.mxu0 0
  %1419 = vmatprep.mubr.bf16.mxu0 0
  %1420 = vmatmul.mubr.bf16.gmra.mrb[0].mxu0 %v1382
  %v1421 = vpop.f32.mrb[0].mxu0
  %v1422 = vadd.f32 0.0, %v1421
  %v1423 = vpop.f32.mrb[0].mxu0
  %v1424 = vpop.f32.mrb[0].mxu0
  %v1425 = vadd.f32 0.0, %v1424
  %v1426 = vpop.f32.mrb[0].mxu0
  %1427 = vdwg.mxu0
  %v1428 = vpack.c.bf16 %v1378, %v1375
  %v1429 = vpack.c.bf16 %v1425, %v1422
  %v1431 = vsel %vm321, %v1428, 0
  %v1433 = vsel %vm321, %v1429, 0
  %v1434 = vsel %vm214, %v1431, 0
  %v1436 = vsel %vm214, %v1433, 0
  %1440 = vrot.lane.b32.xlu0 %v1428, 8
  %v1441 = vpop.permute.xlu0 %1440
  %1442 = vrot.lane.b32.xlu0 %v1429, 8
  %v1443 = vpop.permute.xlu0 %1442
  %v1445 = vsel %vm321, 0, %v1441
  %v1447 = vsel %vm321, 0, %v1443
  %v1448 = vsel %vm214, %v1445, 0
  %v1450 = vsel %vm214, %v1447, 0
  %1452 = vrot.lane.b32.xlu0 %v1428, 16
  %v1453 = vpop.permute.xlu0 %1452
  %1454 = vrot.lane.b32.xlu0 %v1429, 16
  %v1455 = vpop.permute.xlu0 %1454
  %v1457 = vsel %vm214, 0, %v1453
  %v1460 = vsel %vm214, 0, %v1455
  %v1462 = vpack.c.bf16 %v1108, %v1108
  %v1463 = vpack.c.bf16 %v1111, %v1111
  %v1465 = vsel %vm453, %v1462, 0
  %1467 = vmatprep.subr.bf16.mxu0 0
  %1468 = vmatpush1.bf16.msra.mxu0 %v1434
  %1469 = vmatprep.subr.bf16.mxu0 0
  %1470 = vmatpush1.bf16.msra.mxu0 %v1448
  %1471 = vmatprep.subr.bf16.mxu0 0
  %1472 = vmatpush1.bf16.msra.mxu0 %v1457
  %1473 = vmatprep.subr.bf16.mxu0 0
  %1474 = vmatpush1.bf16.msra.mxu0 0
  %1475 = vmatprep.subr.bf16.mxu0 0
  %1476 = vmatpush1.bf16.msra.mxu0 0
  %1477 = vmatprep.subr.bf16.mxu0 0
  %1478 = vmatpush1.bf16.msra.mxu0 0
  %1479 = vmatprep.subr.bf16.mxu0 0
  %1480 = vmatpush1.bf16.msra.mxu0 0
  %1481 = vmatprep.subr.bf16.mxu0 0
  %1482 = vmatpush1.bf16.msra.mxu0 0
  %1483 = vmatprep.subr.bf16.mxu0 0
  %1484 = vmatpush1.bf16.msra.mxu0 0
  %1485 = vmatprep.subr.bf16.mxu0 0
  %1486 = vmatpush1.bf16.msra.mxu0 0
  %1487 = vmatprep.subr.bf16.mxu0 0
  %1488 = vmatpush1.bf16.msra.mxu0 0
  %1489 = vmatprep.subr.bf16.mxu0 0
  %1490 = vmatpush1.bf16.msra.mxu0 0
  %1491 = vmatprep.subr.bf16.mxu0 0
  %1492 = vmatpush1.bf16.msra.mxu0 0
  %1493 = vmatprep.subr.bf16.mxu0 0
  %1494 = vmatpush1.bf16.msra.mxu0 0
  %1495 = vmatprep.subr.bf16.mxu0 0
  %1496 = vmatpush1.bf16.msra.mxu0 0
  %1497 = vmatprep.subr.bf16.mxu0 0
  %1498 = vmatpush1.bf16.msra.mxu0 0
  %1499 = vmatprep.mubr.bf16.mxu0 0
  %1500 = vmatmul.mubr.bf16.gmra.mrb[0].mxu0 %v1465
  %v1501 = vpop.f32.mrb[0].mxu0
  %v1502 = vadd.f32 0.0, %v1501
  %v1503 = vpop.f32.mrb[0].mxu0
  %v1504 = vpop.f32.mrb[0].mxu0
  %v1505 = vpop.f32.mrb[0].mxu0
  %1506 = vdwg.mxu0
  %v1508 = vsel %vm453, %v1463, 0
  %1510 = vmatprep.subr.bf16.mxu0 0
  %1511 = vmatpush1.bf16.msra.mxu0 %v1436
  %1512 = vmatprep.subr.bf16.mxu0 0
  %1513 = vmatpush1.bf16.msra.mxu0 %v1450
  %1514 = vmatprep.subr.bf16.mxu0 0
  %1515 = vmatpush1.bf16.msra.mxu0 %v1460
  %1516 = vmatprep.subr.bf16.mxu0 0
  %1517 = vmatpush1.bf16.msra.mxu0 0
  %1518 = vmatprep.subr.bf16.mxu0 0
  %1519 = vmatpush1.bf16.msra.mxu0 0
  %1520 = vmatprep.subr.bf16.mxu0 0
  %1521 = vmatpush1.bf16.msra.mxu0 0
  %1522 = vmatprep.subr.bf16.mxu0 0
  %1523 = vmatpush1.bf16.msra.mxu0 0
  %1524 = vmatprep.subr.bf16.mxu0 0
  %1525 = vmatpush1.bf16.msra.mxu0 0
  %1526 = vmatprep.subr.bf16.mxu0 0
  %1527 = vmatpush1.bf16.msra.mxu0 0
  %1528 = vmatprep.subr.bf16.mxu0 0
  %1529 = vmatpush1.bf16.msra.mxu0 0
  %1530 = vmatprep.subr.bf16.mxu0 0
  %1531 = vmatpush1.bf16.msra.mxu0 0
  %1532 = vmatprep.subr.bf16.mxu0 0
  %1533 = vmatpush1.bf16.msra.mxu0 0
  %1534 = vmatprep.subr.bf16.mxu0 0
  %1535 = vmatpush1.bf16.msra.mxu0 0
  %1536 = vmatprep.subr.bf16.mxu0 0
  %1537 = vmatpush1.bf16.msra.mxu0 0
  %1538 = vmatprep.subr.bf16.mxu0 0
  %1539 = vmatpush1.bf16.msra.mxu0 0
  %1540 = vmatprep.subr.bf16.mxu0 0
  %1541 = vmatpush1.bf16.msra.mxu0 0
  %1542 = vmatprep.mubr.bf16.mxu0 0
  %1543 = vmatmul.mubr.bf16.gmra.mrb[0].mxu0 %v1508
  %v1544 = vpop.f32.mrb[0].mxu0
  %v1545 = vadd.f32 0.0, %v1544
  %v1546 = vpop.f32.mrb[0].mxu0
  %v1547 = vpop.f32.mrb[0].mxu0
  %v1548 = vpop.f32.mrb[0].mxu0
  %1549 = vdwg.mxu0
  %v1550 = vpack.c.bf16 %v1502, %v1502
  %v1551 = vpack.c.bf16 %v1545, %v1545
  %1552 = vst.msk [vmem:[%s5 + $0xc] sm:$0xf] %vm25, %v1550
  %1553 = vst.msk [vmem:[%s5 + $0x20] sm:$0xf] %vm25, %v1551
  %s1554 = scalar_lea.vmem %s2, 36
  %v1555 = vld [vmem:[%s1554] sm:$0xf]
  %v1556 = vld [vmem:[%s1554 + $0x4] sm:$0xf]
  %v1557 = vld [vmem:[%s1554 + $0x8] sm:$0xf]
  %s1558 = scalar_lea.vmem %s3, 36
  %v1559 = vld [vmem:[%s1558] sm:$0xf]
  %v1560 = vld [vmem:[%s1558 + $0x4] sm:$0xf]
  %v1561 = vld [vmem:[%s1558 + $0x8] sm:$0xf]
  %s1562 = scalar_lea.vmem %s4, 36
  %v1563 = vld [vmem:[%s1562] sm:$0xf]
  %v1564 = vld [vmem:[%s1562 + $0x4] sm:$0xf]
  %v1565 = vld [vmem:[%s1562 + $0x8] sm:$0xf]
  %v1569 = vunpack.c.l.b16 %v1555
  %v1570 = vunpack.c.l.b16 %v1556
  %v1571 = vunpack.c.l.b16 %v1557
  %v1572 = vpack.c.b16 %v1570, %v1569
  %v1573 = vpack.c.b16 %v1571, %v1571
  %v1576 = vsel %vm55, %v1573, 0
  %1578 = vmatprep.subr.bf16.mxu0 0
  %1579 = vmatpush1.bf16.msra.mxu0 %v1572
  %1580 = vmatprep.subr.bf16.mxu0 0
  %1581 = vmatpush1.bf16.msra.mxu0 %v1576
  %1582 = vmatprep.subr.bf16.mxu0 0
  %1583 = vmatpush1.bf16.msra.mxu0 0
  %1584 = vmatprep.subr.bf16.mxu0 0
  %1585 = vmatpush1.bf16.msra.mxu0 0
  %1586 = vmatprep.subr.bf16.mxu0 0
  %1587 = vmatpush1.bf16.msra.mxu0 0
  %1588 = vmatprep.subr.bf16.mxu0 0
  %1589 = vmatpush1.bf16.msra.mxu0 0
  %1590 = vmatprep.subr.bf16.mxu0 0
  %1591 = vmatpush1.bf16.msra.mxu0 0
  %1592 = vmatprep.subr.bf16.mxu0 0
  %1593 = vmatpush1.bf16.msra.mxu0 0
  %1594 = vmatprep.subr.bf16.mxu0 0
  %1595 = vmatpush1.bf16.msra.mxu0 0
  %1596 = vmatprep.subr.bf16.mxu0 0
  %1597 = vmatpush1.bf16.msra.mxu0 0
  %1598 = vmatprep.subr.bf16.mxu0 0
  %1599 = vmatpush1.bf16.msra.mxu0 0
  %1600 = vmatprep.subr.bf16.mxu0 0
  %1601 = vmatpush1.bf16.msra.mxu0 0
  %1602 = vmatprep.subr.bf16.mxu0 0
  %1603 = vmatpush1.bf16.msra.mxu0 0
  %1604 = vmatprep.subr.bf16.mxu0 0
  %1605 = vmatpush1.bf16.msra.mxu0 0
  %1606 = vmatprep.subr.bf16.mxu0 0
  %1607 = vmatpush1.bf16.msra.mxu0 0
  %1608 = vmatprep.subr.bf16.mxu0 0
  %1609 = vmatpush1.bf16.msra.mxu0 0
  %1610 = vmatprep.mubr.bf16.mxu0 0
  %1611 = vmatmul.mubr.bf16.gmra.mrb[0].mxu0 %v571
  %v1612 = vpop.f32.mrb[0].mxu0
  %v1613 = vadd.f32 0.0, %v1612
  %v1614 = vpop.f32.mrb[0].mxu0
  %v1615 = vpop.f32.mrb[0].mxu0
  %v1616 = vadd.f32 0.0, %v1615
  %v1617 = vpop.f32.mrb[0].mxu0
  %1618 = vdwg.mxu0
  %v1621 = vunpack.c.l.b16 %v1550
  %v1622 = vunpack.c.l.b16 %v1551
  %v1623 = vpack.c.b16 %v1622, %v1621
  %v1627 = vunpack.c.l.b16 %v1559
  %v1628 = vunpack.c.l.b16 %v1560
  %v1629 = vunpack.c.l.b16 %v1561
  %v1630 = vpack.c.b16 %v1628, %v1627
  %v1631 = vpack.c.b16 %v1629, %v1629
  %v1634 = vsel %vm51, %v1623, 0
  %v1637 = vsel %vm55, %v1631, 0
  %1639 = vmatprep.subr.bf16.mxu0 0
  %1640 = vmatpush1.bf16.msra.mxu0 %v1630
  %1641 = vmatprep.subr.bf16.mxu0 0
  %1642 = vmatpush1.bf16.msra.mxu0 %v1637
  %1643 = vmatprep.subr.bf16.mxu0 0
  %1644 = vmatpush1.bf16.msra.mxu0 0
  %1645 = vmatprep.subr.bf16.mxu0 0
  %1646 = vmatpush1.bf16.msra.mxu0 0
  %1647 = vmatprep.subr.bf16.mxu0 0
  %1648 = vmatpush1.bf16.msra.mxu0 0
  %1649 = vmatprep.subr.bf16.mxu0 0
  %1650 = vmatpush1.bf16.msra.mxu0 0
  %1651 = vmatprep.subr.bf16.mxu0 0
  %1652 = vmatpush1.bf16.msra.mxu0 0
  %1653 = vmatprep.subr.bf16.mxu0 0
  %1654 = vmatpush1.bf16.msra.mxu0 0
  %1655 = vmatprep.subr.bf16.mxu0 0
  %1656 = vmatpush1.bf16.msra.mxu0 0
  %1657 = vmatprep.subr.bf16.mxu0 0
  %1658 = vmatpush1.bf16.msra.mxu0 0
  %1659 = vmatprep.subr.bf16.mxu0 0
  %1660 = vmatpush1.bf16.msra.mxu0 0
  %1661 = vmatprep.subr.bf16.mxu0 0
  %1662 = vmatpush1.bf16.msra.mxu0 0
  %1663 = vmatprep.subr.bf16.mxu0 0
  %1664 = vmatpush1.bf16.msra.mxu0 0
  %1665 = vmatprep.subr.bf16.mxu0 0
  %1666 = vmatpush1.bf16.msra.mxu0 0
  %1667 = vmatprep.subr.bf16.mxu0 0
  %1668 = vmatpush1.bf16.msra.mxu0 0
  %1669 = vmatprep.subr.bf16.mxu0 0
  %1670 = vmatpush1.bf16.msra.mxu0 0
  %1671 = vmatprep.mubr.bf16.mxu0 0
  %1672 = vmatmul.mubr.bf16.gmra.mrb[0].mxu0 %v1634
  %v1673 = vpop.f32.mrb[0].mxu0
  %v1674 = vadd.f32 0.0, %v1673
  %v1675 = vpop.f32.mrb[0].mxu0
  %v1676 = vpop.f32.mrb[0].mxu0
  %v1677 = vadd.f32 0.0, %v1676
  %v1678 = vpop.f32.mrb[0].mxu0
  %1679 = vdwg.mxu0
  %v1683 = vunpack.c.l.b16 %v1563
  %v1684 = vunpack.c.l.b16 %v1564
  %v1685 = vunpack.c.l.b16 %v1565
  %v1686 = vpack.c.b16 %v1684, %v1683
  %v1687 = vpack.c.b16 %v1685, %v1685
  %v1690 = vsel %vm55, %v1687, 0
  %1692 = vmatprep.subr.bf16.mxu0 0
  %1693 = vmatpush1.bf16.msra.mxu0 %v1686
  %1694 = vmatprep.subr.bf16.mxu0 0
  %1695 = vmatpush1.bf16.msra.mxu0 %v1690
  %1696 = vmatprep.subr.bf16.mxu0 0
  %1697 = vmatpush1.bf16.msra.mxu0 0
  %1698 = vmatprep.subr.bf16.mxu0 0
  %1699 = vmatpush1.bf16.msra.mxu0 0
  %1700 = vmatprep.subr.bf16.mxu0 0
  %1701 = vmatpush1.bf16.msra.mxu0 0
  %1702 = vmatprep.subr.bf16.mxu0 0
  %1703 = vmatpush1.bf16.msra.mxu0 0
  %1704 = vmatprep.subr.bf16.mxu0 0
  %1705 = vmatpush1.bf16.msra.mxu0 0
  %1706 = vmatprep.subr.bf16.mxu0 0
  %1707 = vmatpush1.bf16.msra.mxu0 0
  %1708 = vmatprep.subr.bf16.mxu0 0
  %1709 = vmatpush1.bf16.msra.mxu0 0
  %1710 = vmatprep.subr.bf16.mxu0 0
  %1711 = vmatpush1.bf16.msra.mxu0 0
  %1712 = vmatprep.subr.bf16.mxu0 0
  %1713 = vmatpush1.bf16.msra.mxu0 0
  %1714 = vmatprep.subr.bf16.mxu0 0
  %1715 = vmatpush1.bf16.msra.mxu0 0
  %1716 = vmatprep.subr.bf16.mxu0 0
  %1717 = vmatpush1.bf16.msra.mxu0 0
  %1718 = vmatprep.subr.bf16.mxu0 0
  %1719 = vmatpush1.bf16.msra.mxu0 0
  %1720 = vmatprep.subr.bf16.mxu0 0
  %1721 = vmatpush1.bf16.msra.mxu0 0
  %1722 = vmatprep.subr.bf16.mxu0 0
  %1723 = vmatpush1.bf16.msra.mxu0 0
  %1724 = vmatprep.mubr.bf16.mxu0 0
  %1725 = vmatmul.mubr.bf16.gmra.mrb[0].mxu0 %v1634
  %v1726 = vpop.f32.mrb[0].mxu0
  %v1727 = vadd.f32 0.0, %v1726
  %v1728 = vpop.f32.mrb[0].mxu0
  %v1729 = vpop.f32.mrb[0].mxu0
  %v1730 = vadd.f32 0.0, %v1729
  %v1731 = vpop.f32.mrb[0].mxu0
  %1732 = vdwg.mxu0
  %v1733 = vsel %vm214, %v1674, -inf
  %v1734 = vrot.slane %v1733, 4
  %v1735 = vmax.f32 %v1733, %v1734
  %v1736 = vrot.slane %v1735, 2
  %v1737 = vmax.f32 %v1735, %v1736
  %v1738 = vrot.slane %v1737, 1
  %v1739 = vmax.f32 %v1737, %v1738
  %v1740 = vsel %vm214, %v1677, -inf
  %v1741 = vrot.slane %v1740, 4
  %v1742 = vmax.f32 %v1740, %v1741
  %v1743 = vrot.slane %v1742, 2
  %v1744 = vmax.f32 %v1742, %v1743
  %v1745 = vrot.slane %v1744, 1
  %v1746 = vmax.f32 %v1744, %v1745
  %v1747 = vsub.f32 %v1674, %v1739
  %v1748 = vsub.f32 %v1677, %v1746
  %v1749 = vmul.f32 %v1747, 1.442695
  %v1750 = vpow.pop %v1749
  %v1751 = vmul.f32 %v1748, 1.442695
  %v1752 = vpow.pop %v1751
  %v1753 = vsel %vm214, %v1750, 0.0
  %v1754 = vrot.slane %v1753, 4
  %v1755 = vadd.f32 %v1753, %v1754
  %v1756 = vrot.slane %v1755, 2
  %v1757 = vadd.f32 %v1755, %v1756
  %v1758 = vrot.slane %v1757, 1
  %v1759 = vadd.f32 %v1757, %v1758
  %v1760 = vsel %vm214, %v1752, 0.0
  %v1761 = vrot.slane %v1760, 4
  %v1762 = vadd.f32 %v1760, %v1761
  %v1763 = vrot.slane %v1762, 2
  %v1764 = vadd.f32 %v1762, %v1763
  %v1765 = vrot.slane %v1764, 1
  %v1766 = vadd.f32 %v1764, %v1765
  %v1767 = vrcp.pop %v1759
  %v1768 = vmul.f32 %v1750, %v1767
  %v1769 = vrcp.pop %v1766
  %v1770 = vmul.f32 %v1752, %v1769
  %1771 = vxpose.xlu0.b32.start [1/16] %v1768, 128
  %1772 = vxpose.xlu0.b32.cont [2/16] 0.0, 128
  %1773 = vxpose.xlu0.b32.cont [3/16] 0.0, 128
  %1774 = vxpose.xlu0.b32.cont [4/16] 0.0, 128
  %1775 = vxpose.xlu0.b32.cont [5/16] 0.0, 128
  %1776 = vxpose.xlu0.b32.cont [6/16] 0.0, 128
  %1777 = vxpose.xlu0.b32.cont [7/16] 0.0, 128
  %1778 = vxpose.xlu0.b32.cont [8/16] 0.0, 128
  %1779 = vxpose.xlu0.b32.cont [9/16] 0.0, 128
  %1780 = vxpose.xlu0.b32.cont [10/16] 0.0, 128
  %1781 = vxpose.xlu0.b32.cont [11/16] 0.0, 128
  %1782 = vxpose.xlu0.b32.cont [12/16] 0.0, 128
  %1783 = vxpose.xlu0.b32.cont [13/16] 0.0, 128
  %1784 = vxpose.xlu0.b32.cont [14/16] 0.0, 128
  %1785 = vxpose.xlu0.b32.cont [15/16] 0.0, 128
  %1786 = vxpose.xlu0.b32.end [16/16] 0.0, 128
  %v1787 = vpop.trf.xlu0
  %v1788 = vpop.trf.xlu0
  %v1789 = vpop.trf.xlu0
  %v1790 = vpop.trf.xlu0
  %v1791 = vpop.trf.xlu0
  %v1792 = vpop.trf.xlu0
  %v1793 = vpop.trf.xlu0
  %v1794 = vpop.trf.xlu0
  %v1795 = vpop.trf.xlu0
  %v1796 = vpop.trf.xlu0
  %v1797 = vpop.trf.xlu0
  %v1798 = vpop.trf.xlu0
  %v1799 = vpop.trf.xlu0
  %v1800 = vpop.trf.xlu0
  %v1801 = vpop.trf.xlu0
  %v1802 = vpop.trf.xlu0
  %1803 = vxpose.xlu0.b32.start [1/16] %v1770, 128
  %1804 = vxpose.xlu0.b32.cont [2/16] 0.0, 128
  %1805 = vxpose.xlu0.b32.cont [3/16] 0.0, 128
  %1806 = vxpose.xlu0.b32.cont [4/16] 0.0, 128
  %1807 = vxpose.xlu0.b32.cont [5/16] 0.0, 128
  %1808 = vxpose.xlu0.b32.cont [6/16] 0.0, 128
  %1809 = vxpose.xlu0.b32.cont [7/16] 0.0, 128
  %1810 = vxpose.xlu0.b32.cont [8/16] 0.0, 128
  %1811 = vxpose.xlu0.b32.cont [9/16] 0.0, 128
  %1812 = vxpose.xlu0.b32.cont [10/16] 0.0, 128
  %1813 = vxpose.xlu0.b32.cont [11/16] 0.0, 128
  %1814 = vxpose.xlu0.b32.cont [12/16] 0.0, 128
  %1815 = vxpose.xlu0.b32.cont [13/16] 0.0, 128
  %1816 = vxpose.xlu0.b32.cont [14/16] 0.0, 128
  %1817 = vxpose.xlu0.b32.cont [15/16] 0.0, 128
  %1818 = vxpose.xlu0.b32.end [16/16] 0.0, 128
  %v1819 = vpop.trf.xlu0
  %v1820 = vpop.trf.xlu0
  %v1821 = vpop.trf.xlu0
  %v1822 = vpop.trf.xlu0
  %v1823 = vpop.trf.xlu0
  %v1824 = vpop.trf.xlu0
  %v1825 = vpop.trf.xlu0
  %v1826 = vpop.trf.xlu0
  %v1827 = vpop.trf.xlu0
  %v1828 = vpop.trf.xlu0
  %v1829 = vpop.trf.xlu0
  %v1830 = vpop.trf.xlu0
  %v1831 = vpop.trf.xlu0
  %v1832 = vpop.trf.xlu0
  %v1833 = vpop.trf.xlu0
  %v1834 = vpop.trf.xlu0
  %v1835 = vpack.c.bf16 %v1788, %v1787
  %v1836 = vpack.c.bf16 %v1820, %v1819
  %v1837 = vpack.c.bf16 %v1727, %v1727
  %v1838 = vpack.c.bf16 %v1730, %v1730
  %v1840 = vsel %vm321, %v1835, 0
  %v1843 = vsel %vm55, %v1837, 0
  %1845 = vmatprep.subr.bf16.mxu0 0
  %1846 = vmatpush1.bf16.msra.mxu0 %v1843
  %1847 = vmatprep.subr.bf16.mxu0 0
  %1848 = vmatpush1.bf16.msra.mxu0 0
  %1849 = vmatprep.subr.bf16.mxu0 0
  %1850 = vmatpush1.bf16.msra.mxu0 0
  %1851 = vmatprep.subr.bf16.mxu0 0
  %1852 = vmatpush1.bf16.msra.mxu0 0
  %1853 = vmatprep.subr.bf16.mxu0 0
  %1854 = vmatpush1.bf16.msra.mxu0 0
  %1855 = vmatprep.subr.bf16.mxu0 0
  %1856 = vmatpush1.bf16.msra.mxu0 0
  %1857 = vmatprep.subr.bf16.mxu0 0
  %1858 = vmatpush1.bf16.msra.mxu0 0
  %1859 = vmatprep.subr.bf16.mxu0 0
  %1860 = vmatpush1.bf16.msra.mxu0 0
  %1861 = vmatprep.subr.bf16.mxu0 0
  %1862 = vmatpush1.bf16.msra.mxu0 0
  %1863 = vmatprep.subr.bf16.mxu0 0
  %1864 = vmatpush1.bf16.msra.mxu0 0
  %1865 = vmatprep.subr.bf16.mxu0 0
  %1866 = vmatpush1.bf16.msra.mxu0 0
  %1867 = vmatprep.subr.bf16.mxu0 0
  %1868 = vmatpush1.bf16.msra.mxu0 0
  %1869 = vmatprep.subr.bf16.mxu0 0
  %1870 = vmatpush1.bf16.msra.mxu0 0
  %1871 = vmatprep.subr.bf16.mxu0 0
  %1872 = vmatpush1.bf16.msra.mxu0 0
  %1873 = vmatprep.subr.bf16.mxu0 0
  %1874 = vmatpush1.bf16.msra.mxu0 0
  %1875 = vmatprep.subr.bf16.mxu0 0
  %1876 = vmatpush1.bf16.msra.mxu0 0
  %1877 = vmatprep.mubr.bf16.mxu0 0
  %1878 = vmatmul.mubr.bf16.gmra.mrb[0].mxu0 %v1840
  %v1879 = vpop.f32.mrb[0].mxu0
  %v1880 = vadd.f32 0.0, %v1879
  %v1881 = vpop.f32.mrb[0].mxu0
  %v1882 = vpop.f32.mrb[0].mxu0
  %v1883 = vadd.f32 0.0, %v1882
  %v1884 = vpop.f32.mrb[0].mxu0
  %1885 = vdwg.mxu0
  %v1887 = vsel %vm321, %v1836, 0
  %v1890 = vsel %vm55, %v1838, 0
  %1892 = vmatprep.subr.bf16.mxu0 0
  %1893 = vmatpush1.bf16.msra.mxu0 %v1890
  %1894 = vmatprep.subr.bf16.mxu0 0
  %1895 = vmatpush1.bf16.msra.mxu0 0
  %1896 = vmatprep.subr.bf16.mxu0 0
  %1897 = vmatpush1.bf16.msra.mxu0 0
  %1898 = vmatprep.subr.bf16.mxu0 0
  %1899 = vmatpush1.bf16.msra.mxu0 0
  %1900 = vmatprep.subr.bf16.mxu0 0
  %1901 = vmatpush1.bf16.msra.mxu0 0
  %1902 = vmatprep.subr.bf16.mxu0 0
  %1903 = vmatpush1.bf16.msra.mxu0 0
  %1904 = vmatprep.subr.bf16.mxu0 0
  %1905 = vmatpush1.bf16.msra.mxu0 0
  %1906 = vmatprep.subr.bf16.mxu0 0
  %1907 = vmatpush1.bf16.msra.mxu0 0
  %1908 = vmatprep.subr.bf16.mxu0 0
  %1909 = vmatpush1.bf16.msra.mxu0 0
  %1910 = vmatprep.subr.bf16.mxu0 0
  %1911 = vmatpush1.bf16.msra.mxu0 0
  %1912 = vmatprep.subr.bf16.mxu0 0
  %1913 = vmatpush1.bf16.msra.mxu0 0
  %1914 = vmatprep.subr.bf16.mxu0 0
  %1915 = vmatpush1.bf16.msra.mxu0 0
  %1916 = vmatprep.subr.bf16.mxu0 0
  %1917 = vmatpush1.bf16.msra.mxu0 0
  %1918 = vmatprep.subr.bf16.mxu0 0
  %1919 = vmatpush1.bf16.msra.mxu0 0
  %1920 = vmatprep.subr.bf16.mxu0 0
  %1921 = vmatpush1.bf16.msra.mxu0 0
  %1922 = vmatprep.subr.bf16.mxu0 0
  %1923 = vmatpush1.bf16.msra.mxu0 0
  %1924 = vmatprep.mubr.bf16.mxu0 0
  %1925 = vmatmul.mubr.bf16.gmra.mrb[0].mxu0 %v1887
  %v1926 = vpop.f32.mrb[0].mxu0
  %v1927 = vadd.f32 0.0, %v1926
  %v1928 = vpop.f32.mrb[0].mxu0
  %v1929 = vpop.f32.mrb[0].mxu0
  %v1930 = vadd.f32 0.0, %v1929
  %v1931 = vpop.f32.mrb[0].mxu0
  %1932 = vdwg.mxu0
  %v1933 = vpack.c.bf16 %v1883, %v1880
  %v1934 = vpack.c.bf16 %v1930, %v1927
  %v1936 = vsel %vm321, %v1933, 0
  %v1938 = vsel %vm321, %v1934, 0
  %v1939 = vsel %vm214, %v1936, 0
  %v1941 = vsel %vm214, %v1938, 0
  %1945 = vrot.lane.b32.xlu0 %v1933, 8
  %v1946 = vpop.permute.xlu0 %1945
  %1947 = vrot.lane.b32.xlu0 %v1934, 8
  %v1948 = vpop.permute.xlu0 %1947
  %v1950 = vsel %vm321, 0, %v1946
  %v1952 = vsel %vm321, 0, %v1948
  %v1953 = vsel %vm214, %v1950, 0
  %v1955 = vsel %vm214, %v1952, 0
  %1957 = vrot.lane.b32.xlu0 %v1933, 16
  %v1958 = vpop.permute.xlu0 %1957
  %1959 = vrot.lane.b32.xlu0 %v1934, 16
  %v1960 = vpop.permute.xlu0 %1959
  %v1962 = vsel %vm214, 0, %v1958
  %v1965 = vsel %vm214, 0, %v1960
  %v1967 = vpack.c.bf16 %v1613, %v1613
  %v1968 = vpack.c.bf16 %v1616, %v1616
  %v1970 = vsel %vm453, %v1967, 0
  %1972 = vmatprep.subr.bf16.mxu0 0
  %1973 = vmatpush1.bf16.msra.mxu0 %v1939
  %1974 = vmatprep.subr.bf16.mxu0 0
  %1975 = vmatpush1.bf16.msra.mxu0 %v1953
  %1976 = vmatprep.subr.bf16.mxu0 0
  %1977 = vmatpush1.bf16.msra.mxu0 %v1962
  %1978 = vmatprep.subr.bf16.mxu0 0
  %1979 = vmatpush1.bf16.msra.mxu0 0
  %1980 = vmatprep.subr.bf16.mxu0 0
  %1981 = vmatpush1.bf16.msra.mxu0 0
  %1982 = vmatprep.subr.bf16.mxu0 0
  %1983 = vmatpush1.bf16.msra.mxu0 0
  %1984 = vmatprep.subr.bf16.mxu0 0
  %1985 = vmatpush1.bf16.msra.mxu0 0
  %1986 = vmatprep.subr.bf16.mxu0 0
  %1987 = vmatpush1.bf16.msra.mxu0 0
  %1988 = vmatprep.subr.bf16.mxu0 0
  %1989 = vmatpush1.bf16.msra.mxu0 0
  %1990 = vmatprep.subr.bf16.mxu0 0
  %1991 = vmatpush1.bf16.msra.mxu0 0
  %1992 = vmatprep.subr.bf16.mxu0 0
  %1993 = vmatpush1.bf16.msra.mxu0 0
  %1994 = vmatprep.subr.bf16.mxu0 0
  %1995 = vmatpush1.bf16.msra.mxu0 0
  %1996 = vmatprep.subr.bf16.mxu0 0
  %1997 = vmatpush1.bf16.msra.mxu0 0
  %1998 = vmatprep.subr.bf16.mxu0 0
  %1999 = vmatpush1.bf16.msra.mxu0 0
  %2000 = vmatprep.subr.bf16.mxu0 0
  %2001 = vmatpush1.bf16.msra.mxu0 0
  %2002 = vmatprep.subr.bf16.mxu0 0
  %2003 = vmatpush1.bf16.msra.mxu0 0
  %2004 = vmatprep.mubr.bf16.mxu0 0
  %2005 = vmatmul.mubr.bf16.gmra.mrb[0].mxu0 %v1970
  %v2006 = vpop.f32.mrb[0].mxu0
  %v2007 = vadd.f32 0.0, %v2006
  %v2008 = vpop.f32.mrb[0].mxu0
  %v2009 = vpop.f32.mrb[0].mxu0
  %v2010 = vpop.f32.mrb[0].mxu0
  %2011 = vdwg.mxu0
  %v2013 = vsel %vm453, %v1968, 0
  %2015 = vmatprep.subr.bf16.mxu0 0
  %2016 = vmatpush1.bf16.msra.mxu0 %v1941
  %2017 = vmatprep.subr.bf16.mxu0 0
  %2018 = vmatpush1.bf16.msra.mxu0 %v1955
  %2019 = vmatprep.subr.bf16.mxu0 0
  %2020 = vmatpush1.bf16.msra.mxu0 %v1965
  %2021 = vmatprep.subr.bf16.mxu0 0
  %2022 = vmatpush1.bf16.msra.mxu0 0
  %2023 = vmatprep.subr.bf16.mxu0 0
  %2024 = vmatpush1.bf16.msra.mxu0 0
  %2025 = vmatprep.subr.bf16.mxu0 0
  %2026 = vmatpush1.bf16.msra.mxu0 0
  %2027 = vmatprep.subr.bf16.mxu0 0
  %2028 = vmatpush1.bf16.msra.mxu0 0
  %2029 = vmatprep.subr.bf16.mxu0 0
  %2030 = vmatpush1.bf16.msra.mxu0 0
  %2031 = vmatprep.subr.bf16.mxu0 0
  %2032 = vmatpush1.bf16.msra.mxu0 0
  %2033 = vmatprep.subr.bf16.mxu0 0
  %2034 = vmatpush1.bf16.msra.mxu0 0
  %2035 = vmatprep.subr.bf16.mxu0 0
  %2036 = vmatpush1.bf16.msra.mxu0 0
  %2037 = vmatprep.subr.bf16.mxu0 0
  %2038 = vmatpush1.bf16.msra.mxu0 0
  %2039 = vmatprep.subr.bf16.mxu0 0
  %2040 = vmatpush1.bf16.msra.mxu0 0
  %2041 = vmatprep.subr.bf16.mxu0 0
  %2042 = vmatpush1.bf16.msra.mxu0 0
  %2043 = vmatprep.subr.bf16.mxu0 0
  %2044 = vmatpush1.bf16.msra.mxu0 0
  %2045 = vmatprep.subr.bf16.mxu0 0
  %2046 = vmatpush1.bf16.msra.mxu0 0
  %2047 = vmatprep.mubr.bf16.mxu0 0
  %2048 = vmatmul.mubr.bf16.gmra.mrb[0].mxu0 %v2013
  %v2049 = vpop.f32.mrb[0].mxu0
  %v2050 = vadd.f32 0.0, %v2049
  %v2051 = vpop.f32.mrb[0].mxu0
  %v2052 = vpop.f32.mrb[0].mxu0
  %v2053 = vpop.f32.mrb[0].mxu0
  %2054 = vdwg.mxu0
  %v2055 = vpack.c.bf16 %v2007, %v2007
  %v2056 = vpack.c.bf16 %v2050, %v2050
  %2057 = vst.msk [vmem:[%s5 + $0x10] sm:$0xf] %vm25, %v2055
  %2058 = vst.msk [vmem:[%s5 + $0x24] sm:$0xf] %vm25, %v2056
  // Predicated region
  $region22: #{tpu_custom_call.1} parent=0 // pred_check
    _
  $region23: #{tpu_custom_call.1} parent=0 // pred_check_branch
    %2060 = sbr.rel (0) target = $region25
  $region24: #{tpu_custom_call.1} parent=0 // pred_region
    _
  $region25: #{tpu_custom_call.1} parent=0 // pred_fallthru
    _
  // Predicated region
  $region26: #{tpu_custom_call.1} parent=0 // pred_check
    _
  $region27: #{tpu_custom_call.1} parent=0 // pred_check_branch
    %2062 = sbr.rel (0) target = $region29
  $region28: #{tpu_custom_call.1} parent=0 // pred_region
    _
  $region29: #{tpu_custom_call.1} parent=0 // pred_fallthru
    _

</llo_original>
